<compile_context>
chip_gen: v7x
topology: tpu7x:2x2x1
jax: 0.10.0
libtpu: 0.0.40
codegen_flags: <defaults>
</compile_context>

<pallas_src>
import functools

import jax
import jax.numpy as jnp
from jax import lax
from jax.experimental import pallas as pl
from jax.experimental.pallas import tpu as pltpu

fBase = 32
imgChans = 3


# ----------------------------- Pallas GEMM kernel -----------------------------

def _gemm_bias_act_kernel(x_ref, w_ref, b_ref, o_ref, *, activation, eta, split):
    # x_ref: (tm, K) bf16, w_ref: (K, N) bf16, b_ref: (1, N) f32, o_ref: (tm, N) f32
    acc = jnp.dot(x_ref[...], w_ref[...], preferred_element_type=jnp.float32)
    acc = acc + b_ref[...]
    if activation == "relu":
        acc = jnp.maximum(acc, 0.0)
    elif activation == "head":
        # first `split` columns: identity (mu); rest: softplus(x) + eta (scale)
        col = lax.broadcasted_iota(jnp.int32, acc.shape, 1)
        acc = jnp.where(col < split, acc, jnp.logaddexp(acc, 0.0) + eta)
    o_ref[...] = acc.astype(o_ref.dtype)


def _choose_tm(M):
    """Row-tile size: as large as comfortably fits VMEM, but keep >= 2 grid
    blocks when M allows so both v7x TensorCores get work (no-op on v5e/v6e)."""
    if M <= 8:
        return M
    cap = 1024
    if M <= 2 * cap and M % 16 == 0:
        return M // 2                       # exactly two parallel blocks
    for tm in (cap, 512, 256, 128, 64, 32, 16, 8):
        if tm <= M and M % tm == 0:
            return tm
    return min(M, 256)                      # ragged tail handled by cdiv grid


def gemm_bias_act(x, w, b, activation="none", eta=0.0, split=0):
    """x: (M, K) bf16, w: (K, N) bf16, b: (N,) f32 -> (M, N) f32 with fused
    bias + activation."""
    M, K = x.shape
    Kw, N = w.shape
    assert K == Kw
    tm = _choose_tm(M)
    grid = (pl.cdiv(M, tm),)

    kernel = functools.partial(_gemm_bias_act_kernel,
                               activation=activation, eta=eta, split=split)
    return pl.pallas_call(
        kernel,
        out_shape=jax.ShapeDtypeStruct((M, N), jnp.float32),
        grid_spec=pltpu.PrefetchScalarGridSpec(
            num_scalar_prefetch=0,
            grid=grid,
            in_specs=[
                pl.BlockSpec((tm, K), lambda i: (i, 0)),
                pl.BlockSpec((K, N), lambda i: (0, 0)),
                pl.BlockSpec((1, N), lambda i: (0, 0)),
            ],
            out_specs=pl.BlockSpec((tm, N), lambda i: (i, 0)),
        ),
        compiler_params=pltpu.CompilerParams(
            dimension_semantics=("parallel",)),
    )(x, w, b.reshape(1, N).astype(jnp.float32))


# ------------------------------ conv = im2col + GEMM --------------------------

def _im2col_nhwc(x, kh, kw, stride, pad):
    """x: (B, H, W, C) -> (B*Ho*Wo, kh*kw*C).  Flatten order (kh, kw, C)
    matches the weight transform in conv2d_nhwc; no transposes needed."""
    B, H, W, C = x.shape
    xp = jnp.pad(x, ((0, 0), (pad, pad), (pad, pad), (0, 0)))
    Ho = (H + 2 * pad - kh) // stride + 1
    Wo = (W + 2 * pad - kw) // stride + 1
    cols = []
    for ki in range(kh):
        for kj in range(kw):
            cols.append(xp[:, ki:ki + stride * Ho:stride,
                           kj:kj + stride * Wo:stride, :])
    p = jnp.stack(cols, axis=3).reshape(B * Ho * Wo, kh * kw * C)
    return p, Ho, Wo


def conv2d_nhwc(x, w, b, stride, pad, activation="none", eta=0.0, split=0):
    """x: (B, H, W, Cin) NHWC; w: (Cout, Cin, kh, kw) (PyTorch layout);
    b: (Cout,) -> (B, Ho, Wo, Cout) NHWC with fused bias + activation."""
    B = x.shape[0]
    Cout, Cin, kh, kw = w.shape
    patches, Ho, Wo = _im2col_nhwc(x, kh, kw, stride, pad)
    wmat = jnp.transpose(w, (2, 3, 1, 0)).reshape(kh * kw * Cin, Cout)
    K = wmat.shape[0]
    if K % 128 != 0:                         # lane-align K (layer 1: 48 -> 128)
        Kp = 128 * pl.cdiv(K, 128)
        patches = jnp.pad(patches, ((0, 0), (0, Kp - K)))
        wmat = jnp.pad(wmat, ((0, Kp - K), (0, 0)))
    out = gemm_bias_act(patches.astype(jnp.bfloat16),
                        wmat.astype(jnp.bfloat16),
                        b, activation=activation, eta=eta, split=split)
    return out.reshape(B, Ho, Wo, Cout)


# ------------------------------ ImageEncoder forward --------------------------

def image_encoder_forward(params, x_nchw, eta=1e-6):
    # Single layout conversion at the model boundary; everything after is NHWC.
    e = jnp.transpose(x_nchw, (0, 2, 3, 1))
    for (w, b) in params["enc"]:
        e = conv2d_nhwc(e, w, b, stride=2, pad=1, activation="relu")
    # Fused mu / scale head: one GEMM with N = 2*latentDim, split in-kernel.
    c1w, c1b = params["c1"]
    c2w, c2b = params["c2"]
    L = c1w.shape[0]
    wh = jnp.concatenate([c1w, c2w], axis=0)          # (2L, fBase*8, 4, 4)
    bh = jnp.concatenate([c1b, c2b], axis=0)          # (2L,)
    out = conv2d_nhwc(e, wh, bh, stride=1, pad=0,
                      activation="head", eta=eta, split=L)
    out = out.reshape(e.shape[0], 2 * L)
    mu, sc = out[:, :L], out[:, L:]
    # PyTorch: .squeeze() on (B, latentDim, 1, 1) -> (B, latentDim) for B > 1
    return jnp.squeeze(mu), jnp.squeeze(sc)


# ------------------------------ reference (pure JAX, f32) ----------------------

def _conv_ref(x, w, b, stride, pad):
    out = lax.conv_general_dilated(
        x, w, window_strides=(stride, stride),
        padding=((pad, pad), (pad, pad)),
        dimension_numbers=("NCHW", "OIHW", "NCHW"))
    return out + b.reshape(1, -1, 1, 1)


def image_encoder_ref(params, x, eta=1e-6):
    e = x
    for (w, b) in params["enc"]:
        e = jnp.maximum(_conv_ref(e, w, b, 2, 1), 0.0)
    mu = _conv_ref(e, params["c1"][0], params["c1"][1], 1, 0)
    sc = jnp.logaddexp(_conv_ref(e, params["c2"][0], params["c2"][1], 1, 0), 0.0) + eta
    return jnp.squeeze(mu), jnp.squeeze(sc)


# ------------------------------ parameter init ---------------------------------

def init_params(key, latent_dim):
    chans = [imgChans, fBase, fBase * 2, fBase * 4, fBase * 8]
    keys = jax.random.split(key, 8)
    enc = []
    for i in range(4):
        cin, cout = chans[i], chans[i + 1]
        fan_in = cin * 4 * 4
        w = jax.random.normal(keys[i], (cout, cin, 4, 4), jnp.float32) / jnp.sqrt(fan_in)
        b = 0.01 * jax.random.normal(jax.random.fold_in(keys[i], 1), (cout,), jnp.float32)
        enc.append((w, b))
    fan_in = fBase * 8 * 4 * 4
    c1w = jax.random.normal(keys[4], (latent_dim, fBase * 8, 4, 4), jnp.float32) / jnp.sqrt(fan_in)
    c1b = 0.01 * jax.random.normal(keys[5], (latent_dim,), jnp.float32)
    c2w = jax.random.normal(keys[6], (latent_dim, fBase * 8, 4, 4), jnp.float32) / jnp.sqrt(fan_in)
    c2b = 0.01 * jax.random.normal(keys[7], (latent_dim,), jnp.float32)
    return {"enc": enc, "c1": (c1w, c1b), "c2": (c2w, c2b)}


# ------------------------------------ main --------------------------------------

if __name__ == "__main__":
    key = jax.random.PRNGKey(0)
    latent_dim = 16
    B, H, W = 2, 64, 64   # four stride-2 4x4 convs + final 4x4 valid conv => 64x64 input
    pkey, xkey = jax.random.split(key)
    params = init_params(pkey, latent_dim)
    x = jax.random.normal(xkey, (B, imgChans, H, W), jnp.float32)

    mu, scale = image_encoder_forward(params, x)
    mu = jax.block_until_ready(mu)
    scale = jax.block_until_ready(scale)

    mu_ref, scale_ref = image_encoder_ref(params, x)
    assert mu.shape == (B, latent_dim) and scale.shape == (B, latent_dim)
    # bf16 GEMM inputs (f32 accumulation) => looser tolerance vs the f32 reference.
    assert jnp.allclose(mu, mu_ref, rtol=5e-2, atol=5e-2)
    assert jnp.allclose(scale, scale_ref, rtol=5e-2, atol=5e-2)
    assert bool(jnp.all(jnp.isfinite(mu))) and bool(jnp.all(jnp.isfinite(scale)))

    print("KERNEL_OK")
</pallas_src>

<mosaic_0001>
module attributes {stable_mosaic.version = 11 : i64} {
  func.func @_gemm_bias_act_kernel(%arg0: i32, %arg1: memref<1024x128xbf16, #tpu.memory_space<vmem>>, %arg2: memref<128x32xbf16, #tpu.memory_space<vmem>>, %arg3: memref<1x32xf32, #tpu.memory_space<vmem>>, %arg4: memref<1024x32xf32, #tpu.memory_space<vmem>>) attributes {dimension_semantics = [#tpu.dimension_semantics<parallel>], iteration_bounds = array<i64: 2>, scalar_prefetch = 0 : i64, scratch_operands = 0 : i64, tpu.core_type = #tpu.core_type<tc>, window_params = [{transform_indices = @transform_0, window_bounds = array<i64: 1024, 128>}, {pipeline_mode = #tpu.pipeline_mode<synchronous>, transform_indices = @transform_1, window_bounds = array<i64: 128, 32>}, {pipeline_mode = #tpu.pipeline_mode<synchronous>, transform_indices = @transform_2, window_bounds = array<i64: 1, 32>}, {transform_indices = @transform_3, window_bounds = array<i64: 1024, 32>}]} {
    %c0 = arith.constant 0 : index
    %c0_0 = arith.constant 0 : index
    %0 = vector.load %arg1[%c0, %c0_0] : memref<1024x128xbf16, #tpu.memory_space<vmem>>, vector<1024x128xbf16>
    %c0_1 = arith.constant 0 : index
    %c0_2 = arith.constant 0 : index
    %1 = vector.load %arg2[%c0_1, %c0_2] : memref<128x32xbf16, #tpu.memory_space<vmem>>, vector<128x32xbf16>
    %cst = arith.constant dense<0.000000e+00> : vector<1024x32xf32>
    %2 = tpu.matmul %0, %1, %cst {dimension_numbers = #tpu.dot_dimension_numbers<[1], [0], [0], [1], [0, 0, 1, 1], [], []>} : vector<1024x128xbf16>, vector<128x32xbf16>, vector<1024x32xf32> -> vector<1024x32xf32>
    %c0_3 = arith.constant 0 : index
    %c0_4 = arith.constant 0 : index
    %3 = vector.load %arg3[%c0_3, %c0_4] : memref<1x32xf32, #tpu.memory_space<vmem>>, vector<1x32xf32>
    %4 = vector.broadcast %3 : vector<1x32xf32> to vector<1024x32xf32>
    %5 = arith.addf %2, %4 : vector<1024x32xf32>
    %cst_5 = arith.constant 0.000000e+00 : f32
    %6 = vector.broadcast %cst_5 : f32 to vector<1024x32xf32>
    %7 = arith.maximumf %5, %6 : vector<1024x32xf32>
    %c0_6 = arith.constant 0 : index
    %c0_7 = arith.constant 0 : index
    %8 = vector.load %arg4[%c0_6, %c0_7] : memref<1024x32xf32, #tpu.memory_space<vmem>>, vector<1024x32xf32>
    tpu.vector_store %arg4[%c0_6, %c0_7], %7 {strides = array<i32>} : memref<1024x32xf32, #tpu.memory_space<vmem>>, vector<1024x32xf32>,
    return
  }
  func.func @transform_0(%arg0: i32) -> (i32, i32) {
    %c0_i32 = arith.constant 0 : i32
    %c0_i32_0 = arith.constant 0 : i32
    return %arg0, %c0_i32 : i32, i32
  }
  func.func @transform_1(%arg0: i32) -> (i32, i32) {
    %c0_i32 = arith.constant 0 : i32
    %c0_i32_0 = arith.constant 0 : i32
    %c0_i32_1 = arith.constant 0 : i32
    return %c0_i32, %c0_i32_0 : i32, i32
  }
  func.func @transform_2(%arg0: i32) -> (i32, i32) {
    %c0_i32 = arith.constant 0 : i32
    %c0_i32_0 = arith.constant 0 : i32
    %c0_i32_1 = arith.constant 0 : i32
    return %c0_i32, %c0_i32_0 : i32, i32
  }
  func.func @transform_3(%arg0: i32) -> (i32, i32) {
    %c0_i32 = arith.constant 0 : i32
    %c0_i32_0 = arith.constant 0 : i32
    return %arg0, %c0_i32 : i32, i32
  }
}

</mosaic_0001>

<llo_original>
// kernel: tpu_custom_call.1
$region0: #{tpu_custom_call.1}
  #allocation0 [shape = 'u32[]', space=smem, size = 0x4, offset = 0x4, fixed_abs, tag = 'smem constant byte address 0x4 - core index']
  #allocation1 [shape = 'u32[144,128]{1,0:T(1,128)}', space=vmem, size = 0x12000, scoped, tag = 'internal scratch']
  %s0 = inlined_call_operand.hbm [shape: bf16[2048,128], index: 0, kind: input, shape index: {}]
  %s1 = inlined_call_operand.vmem [shape: bf16[128,32], index: 1, kind: input, shape index: {}]
  %s2 = inlined_call_operand.vmem [shape: f32[1,32], index: 2, kind: input, shape index: {}]
  %s3 = inlined_call_operand.vmem [shape: f32[2048,32], index: 3, kind: output, shape index: {}]
  %s4 = sld [smem:[#allocation0]]
  $region49: #{tpu_custom_call.1} parent=0
    _
  %s6 = ssub.s32 1, %s4
  %s7 = scalar_select 0, %s6, %s4
  $region1: #{tpu_custom_call.1} parent=0
    #allocation2 [shape = 'u8[524288]{0}', space=vmem, size = 0x80000, scoped, tag = 'input window, operand 0']
    #allocation3 [shape = 's32[2]{0}', space=sflag, size = 0x8, scoped, tag = 'scoped memory for tpu_custom_call.1']
    %8 = vsyncpa [#allocation3], 0
    %s9 = scalar_lea.sflag [#allocation3], 1
    %10 = vsyncpa %s9, 0
    loop: start=0, step=1, limit=4
    $region2: #{tpu_custom_call.1} parent=1 // loop_pre_header
      _
    $region3: #{tpu_custom_call.1} parent=1 // loop_header
      %s12 = sphi 0, %s16
      %p13 = scmp.ge.s32.totalorder %s12, 4
      %s22 = sphi 0, %s24
      %s25 = sphi 0, %s22
      %s26 = sphi 0, %s25
      %s42 = sphi 0, %s26
      %s46 = sphi 0, %s46
      %s48 = sphi 0, %s46
      %s49 = sphi 0, %s48
      %s63 = sphi 0, %s49
      %s67 = sphi 0, %s67
      %s69 = sphi 0, %s67
      %s70 = sphi 0, %s69
      %s84 = sphi 0, %s70
      %s90 = sphi 0, %s92
      %s93 = sphi 0, %s90
      %s94 = sphi 0, %s93
      %s110 = sphi 0, %s94
    $region4: #{tpu_custom_call.1} parent=1 // loop_header_branch
      %15 = sbr.rel (%p13) target = $region8
    $region5: #{tpu_custom_call.1} parent=1 // loop_body
      %s17 = ssub.s32 %s12, 1
      %s18 = ssub.s32 %s12, 2
      %s19 = sadd.s32 %s12, 1
      %s20 = ssub.s32 %s12, %s19
      %p21 = scmp.eq.s32.totalorder %s20, 0
      %s23 = sadd.s32 %s22, 1
      %s24 = scalar_select %p21, %s22, %s23
      %p27 = pneg %p21
      %p28 = scmp.eq.s32.totalorder %s12, 1
      %p29 = por %p27, %p28
      %p30 = scmp.ne.s32.totalorder %s22, %s25
      %p31 = scmp.eq.s32.totalorder %s12, 0
      %p32 = por %p30, %p31
      %p33 = scmp.ne.s32.totalorder %s22, %s25
      %p34 = scmp.eq.s32.totalorder %s17, 1
      %p35 = por %p33, %p34
      %p36 = scmp.ne.s32.totalorder %s25, %s26
      %p37 = scmp.eq.s32.totalorder %s17, 0
      %p38 = por %p36, %p37
      %p39 = scmp.ne.s32.totalorder %s25, %s26
      %p40 = scmp.eq.s32.totalorder %s18, 1
      %p41 = por %p39, %p40
      %p43 = scmp.ne.s32.totalorder %s26, %s42
      %p44 = scmp.eq.s32.totalorder %s18, 0
      %p45 = por %p43, %p44
      %s47 = sadd.s32 %s46, 1
      %p50 = scmp.eq.s32.totalorder %s12, 1
      %p51 = scmp.ne.s32.totalorder %s46, %s48
      %p52 = scmp.eq.s32.totalorder %s12, 0
      %p53 = por %p51, %p52
      %p54 = scmp.ne.s32.totalorder %s46, %s48
      %p55 = scmp.eq.s32.totalorder %s17, 1
      %p56 = por %p54, %p55
      %p57 = scmp.ne.s32.totalorder %s48, %s49
      %p58 = scmp.eq.s32.totalorder %s17, 0
      %p59 = por %p57, %p58
      %p60 = scmp.ne.s32.totalorder %s48, %s49
      %p61 = scmp.eq.s32.totalorder %s18, 1
      %p62 = por %p60, %p61
      %p64 = scmp.ne.s32.totalorder %s49, %s63
      %p65 = scmp.eq.s32.totalorder %s18, 0
      %p66 = por %p64, %p65
      %s68 = sadd.s32 %s67, 1
      %p71 = scmp.eq.s32.totalorder %s12, 1
      %p72 = scmp.ne.s32.totalorder %s67, %s69
      %p73 = scmp.eq.s32.totalorder %s12, 0
      %p74 = por %p72, %p73
      %p75 = scmp.ne.s32.totalorder %s67, %s69
      %p76 = scmp.eq.s32.totalorder %s17, 1
      %p77 = por %p75, %p76
      %p78 = scmp.ne.s32.totalorder %s69, %s70
      %p79 = scmp.eq.s32.totalorder %s17, 0
      %p80 = por %p78, %p79
      %p81 = scmp.ne.s32.totalorder %s69, %s70
      %p82 = scmp.eq.s32.totalorder %s18, 1
      %p83 = por %p81, %p82
      %p85 = scmp.ne.s32.totalorder %s70, %s84
      %p86 = scmp.eq.s32.totalorder %s18, 0
      %p87 = por %p85, %p86
      %s88 = ssub.s32 %s12, %s19
      %p89 = scmp.eq.s32.totalorder %s88, 0
      %s91 = sadd.s32 %s90, 1
      %s92 = scalar_select %p89, %s90, %s91
      %p95 = pneg %p89
      %p96 = scmp.eq.s32.totalorder %s12, 1
      %p97 = por %p95, %p96
      %p98 = scmp.ne.s32.totalorder %s90, %s93
      %p99 = scmp.eq.s32.totalorder %s12, 0
      %p100 = por %p98, %p99
      %p101 = scmp.ne.s32.totalorder %s90, %s93
      %p102 = scmp.eq.s32.totalorder %s17, 1
      %p103 = por %p101, %p102
      %p104 = scmp.ne.s32.totalorder %s93, %s94
      %p105 = scmp.eq.s32.totalorder %s17, 0
      %p106 = por %p104, %p105
      %p107 = scmp.ne.s32.totalorder %s93, %s94
      %p108 = scmp.eq.s32.totalorder %s18, 1
      %p109 = por %p107, %p108
      %p111 = scmp.ne.s32.totalorder %s94, %s110
      %p112 = scmp.eq.s32.totalorder %s18, 0
      %p113 = por %p111, %p112
      %p114 = scmp.le.s32.totalorder 1, %s12
      %p115 = scmp.lt.s32.totalorder %s12, 3
      %p116 = pnand %p114, %p115
      %p117 = pneg %p116
      // Predicated region
      $region9: #{tpu_custom_call.1} parent=5 // pred_check
        _
      $region10: #{tpu_custom_call.1} parent=5 // pred_check_branch
        %119 = sbr.rel (%p116) target = $region12
      $region11: #{tpu_custom_call.1} parent=5 // pred_region
        %s120 = ssub.s32 %s12, 1
        // Predicated region
        $region13: #{tpu_custom_call.1} parent=11 // pred_check
          %p121 = pneg %p59
        $region14: #{tpu_custom_call.1} parent=11 // pred_check_branch
          %123 = sbr.rel (%p121) target = $region16
        $region15: #{tpu_custom_call.1} parent=11 // pred_region
          _
        $region16: #{tpu_custom_call.1} parent=11 // pred_fallthru
          _
        // Predicated region
        $region17: #{tpu_custom_call.1} parent=11 // pred_check
          %p124 = pneg %p80
        $region18: #{tpu_custom_call.1} parent=11 // pred_check_branch
          %126 = sbr.rel (%p124) target = $region20
        $region19: #{tpu_custom_call.1} parent=11 // pred_region
          _
        $region20: #{tpu_custom_call.1} parent=11 // pred_fallthru
          _
      $region12: #{tpu_custom_call.1} parent=5 // pred_fallthru
        _
      %p127 = scmp.lt.s32.totalorder %s12, 2
      // Predicated region
      $region21: #{tpu_custom_call.1} parent=5 // pred_check
        %p128 = pneg %p127
      $region22: #{tpu_custom_call.1} parent=5 // pred_check_branch
        %130 = sbr.rel (%p128) target = $region24
      $region23: #{tpu_custom_call.1} parent=5 // pred_region
        // Predicated region
        $region25: #{tpu_custom_call.1} parent=23 // pred_check
          %p131 = pneg %p32
        $region26: #{tpu_custom_call.1} parent=23 // pred_check_branch
          %133 = sbr.rel (%p131) target = $region28
        $region27: #{tpu_custom_call.1} parent=23 // pred_region
          %s134 = sand.u32 %s22, 1
          %s135 = scalar_lea.sflag [#allocation3], %s134
          %s136 = sand.u32 %s22, 1
          %s137 = smul.addr %s136, 512
          %s138 = scalar_lea.vmem [#allocation2], %s137
          %s139 = smul.u32 128, %s12
          %s141 = ssub.s32 8192, 8192
          %142 = vsyncadd %s135, %s141
          %s143 = smul.addr %s139, 64
          %s144 = scalar_lea.hbm %s0, %s143
          %s145 = sshll.u32 %s138, 4
          %s146 = int_to_ptr.vmem [resolvable:$true] %s145
          %151 = dma.hbm_to_vmem [thread:$0]  %s144, 8192, %s146, %s135, 64, 64, 4
        $region28: #{tpu_custom_call.1} parent=23 // pred_fallthru
          _
      $region24: #{tpu_custom_call.1} parent=5 // pred_fallthru
        _
      %p152 = scmp.le.s32.totalorder 1, %s12
      %p153 = scmp.lt.s32.totalorder %s12, 3
      %p154 = pnand %p152, %p153
      %p155 = pneg %p154
      // Predicated region
      $region29: #{tpu_custom_call.1} parent=5 // pred_check
        _
      $region30: #{tpu_custom_call.1} parent=5 // pred_check_branch
        %157 = sbr.rel (%p154) target = $region32
      $region31: #{tpu_custom_call.1} parent=5 // pred_region
        %s158 = ssub.s32 %s12, 1
        %s159 = sand.u32 %s25, 1
        %s160 = scalar_lea.sflag [#allocation3], %s159
        %s161 = sand.u32 %s25, 1
        %s162 = smul.addr %s161, 512
        %s163 = scalar_lea.vmem [#allocation2], %s162
        // Predicated region
        $region33: #{tpu_custom_call.1} parent=31 // pred_check
          %p164 = pneg %p38
        $region34: #{tpu_custom_call.1} parent=31 // pred_check_branch
          %166 = sbr.rel (%p164) target = $region36
        $region35: #{tpu_custom_call.1} parent=31 // pred_region
          %167 = dma.done %s160, 8192
        $region36: #{tpu_custom_call.1} parent=31 // pred_fallthru
          _
        %s168 = sand.u32 %s25, 1
        %s169 = scalar_lea.sflag [#allocation3], %s168
        %s170 = sand.u32 %s25, 1
        %s171 = smul.addr %s170, 512
        %s172 = scalar_lea.vmem [#allocation2], %s171
        %p173 = pneg %p38
        %p174 = pneg %p35
        %p175 = pneg %p59
        %p176 = pneg %p56
        %p177 = pneg %p80
        %p178 = pneg %p77
        %p179 = pneg %p106
        %p180 = pneg %p103
        %s181 = smul.u32 128, %s17
        %p182 = scmp.lt.s32.totalorder %s181, 255
        %s183 = scalar_select %p182, %s181, 255
        %s184 = smul.addr %s183, 8
        %s185 = scalar_lea.vmem %s3, %s184
        %s186 = smul.u32 128, %s17
        %s187 = smul.u32 128, %s17
        %p188 = scmp.lt.s32.totalorder %s187, 255
        %s189 = scalar_select %p188, %s187, 255
        %s190 = smul.addr %s189, 8
        %s191 = scalar_lea.vmem %s3, %s190
        %s192 = smul.u32 128, %s17
        %v194 = vld [vmem:[%s163] sm:$0xf]
        %v195 = vld [vmem:[%s163 + $0x4] sm:$0xf]
        %v196 = vld [vmem:[%s163 + $0x8] sm:$0xf]
        %v197 = vld [vmem:[%s163 + $0xc] sm:$0xf]
        %v198 = vld [vmem:[%s163 + $0x10] sm:$0xf]
        %v199 = vld [vmem:[%s163 + $0x14] sm:$0xf]
        %v200 = vld [vmem:[%s163 + $0x18] sm:$0xf]
        %v201 = vld [vmem:[%s163 + $0x1c] sm:$0xf]
        %v202 = vld [vmem:[%s163 + $0x20] sm:$0xf]
        %v203 = vld [vmem:[%s163 + $0x24] sm:$0xf]
        %v204 = vld [vmem:[%s163 + $0x28] sm:$0xf]
        %v205 = vld [vmem:[%s163 + $0x2c] sm:$0xf]
        %v206 = vld [vmem:[%s163 + $0x30] sm:$0xf]
        %v207 = vld [vmem:[%s163 + $0x34] sm:$0xf]
        %v208 = vld [vmem:[%s163 + $0x38] sm:$0xf]
        %v209 = vld [vmem:[%s163 + $0x3c] sm:$0xf]
        %v210 = vld [vmem:[%s163 + $0x40] sm:$0xf]
        %v211 = vld [vmem:[%s163 + $0x44] sm:$0xf]
        %v212 = vld [vmem:[%s163 + $0x48] sm:$0xf]
        %v213 = vld [vmem:[%s163 + $0x4c] sm:$0xf]
        %v214 = vld [vmem:[%s163 + $0x50] sm:$0xf]
        %v215 = vld [vmem:[%s163 + $0x54] sm:$0xf]
        %v216 = vld [vmem:[%s163 + $0x58] sm:$0xf]
        %v217 = vld [vmem:[%s163 + $0x5c] sm:$0xf]
        %v218 = vld [vmem:[%s163 + $0x60] sm:$0xf]
        %v219 = vld [vmem:[%s163 + $0x64] sm:$0xf]
        %v220 = vld [vmem:[%s163 + $0x68] sm:$0xf]
        %v221 = vld [vmem:[%s163 + $0x6c] sm:$0xf]
        %v222 = vld [vmem:[%s163 + $0x70] sm:$0xf]
        %v223 = vld [vmem:[%s163 + $0x74] sm:$0xf]
        %v224 = vld [vmem:[%s163 + $0x78] sm:$0xf]
        %v225 = vld [vmem:[%s163 + $0x7c] sm:$0xf]
        %v226 = vld [vmem:[%s163 + $0x80] sm:$0xf]
        %v227 = vld [vmem:[%s163 + $0x84] sm:$0xf]
        %v228 = vld [vmem:[%s163 + $0x88] sm:$0xf]
        %v229 = vld [vmem:[%s163 + $0x8c] sm:$0xf]
        %v230 = vld [vmem:[%s163 + $0x90] sm:$0xf]
        %v231 = vld [vmem:[%s163 + $0x94] sm:$0xf]
        %v232 = vld [vmem:[%s163 + $0x98] sm:$0xf]
        %v233 = vld [vmem:[%s163 + $0x9c] sm:$0xf]
        %v234 = vld [vmem:[%s163 + $0xa0] sm:$0xf]
        %v235 = vld [vmem:[%s163 + $0xa4] sm:$0xf]
        %v236 = vld [vmem:[%s163 + $0xa8] sm:$0xf]
        %v237 = vld [vmem:[%s163 + $0xac] sm:$0xf]
        %v238 = vld [vmem:[%s163 + $0xb0] sm:$0xf]
        %v239 = vld [vmem:[%s163 + $0xb4] sm:$0xf]
        %v240 = vld [vmem:[%s163 + $0xb8] sm:$0xf]
        %v241 = vld [vmem:[%s163 + $0xbc] sm:$0xf]
        %v242 = vld [vmem:[%s163 + $0xc0] sm:$0xf]
        %v243 = vld [vmem:[%s163 + $0xc4] sm:$0xf]
        %v244 = vld [vmem:[%s163 + $0xc8] sm:$0xf]
        %v245 = vld [vmem:[%s163 + $0xcc] sm:$0xf]
        %v246 = vld [vmem:[%s163 + $0xd0] sm:$0xf]
        %v247 = vld [vmem:[%s163 + $0xd4] sm:$0xf]
        %v248 = vld [vmem:[%s163 + $0xd8] sm:$0xf]
        %v249 = vld [vmem:[%s163 + $0xdc] sm:$0xf]
        %v250 = vld [vmem:[%s163 + $0xe0] sm:$0xf]
        %v251 = vld [vmem:[%s163 + $0xe4] sm:$0xf]
        %v252 = vld [vmem:[%s163 + $0xe8] sm:$0xf]
        %v253 = vld [vmem:[%s163 + $0xec] sm:$0xf]
        %v254 = vld [vmem:[%s163 + $0xf0] sm:$0xf]
        %v255 = vld [vmem:[%s163 + $0xf4] sm:$0xf]
        %v256 = vld [vmem:[%s163 + $0xf8] sm:$0xf]
        %v257 = vld [vmem:[%s163 + $0xfc] sm:$0xf]
        %v258 = vld [vmem:[%s163 + $0x100] sm:$0xf]
        %v259 = vld [vmem:[%s163 + $0x104] sm:$0xf]
        %v260 = vld [vmem:[%s163 + $0x108] sm:$0xf]
        %v261 = vld [vmem:[%s163 + $0x10c] sm:$0xf]
        %v262 = vld [vmem:[%s163 + $0x110] sm:$0xf]
        %v263 = vld [vmem:[%s163 + $0x114] sm:$0xf]
        %v264 = vld [vmem:[%s163 + $0x118] sm:$0xf]
        %v265 = vld [vmem:[%s163 + $0x11c] sm:$0xf]
        %v266 = vld [vmem:[%s163 + $0x120] sm:$0xf]
        %v267 = vld [vmem:[%s163 + $0x124] sm:$0xf]
        %v268 = vld [vmem:[%s163 + $0x128] sm:$0xf]
        %v269 = vld [vmem:[%s163 + $0x12c] sm:$0xf]
        %v270 = vld [vmem:[%s163 + $0x130] sm:$0xf]
        %v271 = vld [vmem:[%s163 + $0x134] sm:$0xf]
        %v272 = vld [vmem:[%s163 + $0x138] sm:$0xf]
        %v273 = vld [vmem:[%s163 + $0x13c] sm:$0xf]
        %v274 = vld [vmem:[%s163 + $0x140] sm:$0xf]
        %v275 = vld [vmem:[%s163 + $0x144] sm:$0xf]
        %v276 = vld [vmem:[%s163 + $0x148] sm:$0xf]
        %v277 = vld [vmem:[%s163 + $0x14c] sm:$0xf]
        %v278 = vld [vmem:[%s163 + $0x150] sm:$0xf]
        %v279 = vld [vmem:[%s163 + $0x154] sm:$0xf]
        %v280 = vld [vmem:[%s163 + $0x158] sm:$0xf]
        %v281 = vld [vmem:[%s163 + $0x15c] sm:$0xf]
        %v282 = vld [vmem:[%s163 + $0x160] sm:$0xf]
        %v283 = vld [vmem:[%s163 + $0x164] sm:$0xf]
        %v284 = vld [vmem:[%s163 + $0x168] sm:$0xf]
        %v285 = vld [vmem:[%s163 + $0x16c] sm:$0xf]
        %v286 = vld [vmem:[%s163 + $0x170] sm:$0xf]
        %v287 = vld [vmem:[%s163 + $0x174] sm:$0xf]
        %v288 = vld [vmem:[%s163 + $0x178] sm:$0xf]
        %v289 = vld [vmem:[%s163 + $0x17c] sm:$0xf]
        %v290 = vld [vmem:[%s163 + $0x180] sm:$0xf]
        %v291 = vld [vmem:[%s163 + $0x184] sm:$0xf]
        %v292 = vld [vmem:[%s163 + $0x188] sm:$0xf]
        %v293 = vld [vmem:[%s163 + $0x18c] sm:$0xf]
        %v294 = vld [vmem:[%s163 + $0x190] sm:$0xf]
        %v295 = vld [vmem:[%s163 + $0x194] sm:$0xf]
        %v296 = vld [vmem:[%s163 + $0x198] sm:$0xf]
        %v297 = vld [vmem:[%s163 + $0x19c] sm:$0xf]
        %v298 = vld [vmem:[%s163 + $0x1a0] sm:$0xf]
        %v299 = vld [vmem:[%s163 + $0x1a4] sm:$0xf]
        %v300 = vld [vmem:[%s163 + $0x1a8] sm:$0xf]
        %v301 = vld [vmem:[%s163 + $0x1ac] sm:$0xf]
        %v302 = vld [vmem:[%s163 + $0x1b0] sm:$0xf]
        %v303 = vld [vmem:[%s163 + $0x1b4] sm:$0xf]
        %v304 = vld [vmem:[%s163 + $0x1b8] sm:$0xf]
        %v305 = vld [vmem:[%s163 + $0x1bc] sm:$0xf]
        %v306 = vld [vmem:[%s163 + $0x1c0] sm:$0xf]
        %v307 = vld [vmem:[%s163 + $0x1c4] sm:$0xf]
        %v308 = vld [vmem:[%s163 + $0x1c8] sm:$0xf]
        %v309 = vld [vmem:[%s163 + $0x1cc] sm:$0xf]
        %v310 = vld [vmem:[%s163 + $0x1d0] sm:$0xf]
        %v311 = vld [vmem:[%s163 + $0x1d4] sm:$0xf]
        %v312 = vld [vmem:[%s163 + $0x1d8] sm:$0xf]
        %v313 = vld [vmem:[%s163 + $0x1dc] sm:$0xf]
        %v314 = vld [vmem:[%s163 + $0x1e0] sm:$0xf]
        %v315 = vld [vmem:[%s163 + $0x1e4] sm:$0xf]
        %v316 = vld [vmem:[%s163 + $0x1e8] sm:$0xf]
        %v317 = vld [vmem:[%s163 + $0x1ec] sm:$0xf]
        %v318 = vld [vmem:[%s163 + $0x1f0] sm:$0xf]
        %v319 = vld [vmem:[%s163 + $0x1f4] sm:$0xf]
        %v320 = vld [vmem:[%s163 + $0x1f8] sm:$0xf]
        %v321 = vld [vmem:[%s163 + $0x1fc] sm:$0xf]
        %v322 = vld [vmem:[%s1] sm:$0xf]
        %v323 = vld [vmem:[%s1 + $0x4] sm:$0xf]
        %v324 = vld [vmem:[%s1 + $0x8] sm:$0xf]
        %v325 = vld [vmem:[%s1 + $0xc] sm:$0xf]
        %v326 = vld [vmem:[%s1 + $0x10] sm:$0xf]
        %v327 = vld [vmem:[%s1 + $0x14] sm:$0xf]
        %v328 = vld [vmem:[%s1 + $0x18] sm:$0xf]
        %v329 = vld [vmem:[%s1 + $0x1c] sm:$0xf]
        %v330 = vld [vmem:[%s1 + $0x20] sm:$0xf]
        %v331 = vld [vmem:[%s1 + $0x24] sm:$0xf]
        %v332 = vld [vmem:[%s1 + $0x28] sm:$0xf]
        %v333 = vld [vmem:[%s1 + $0x2c] sm:$0xf]
        %v334 = vld [vmem:[%s1 + $0x30] sm:$0xf]
        %v335 = vld [vmem:[%s1 + $0x34] sm:$0xf]
        %v336 = vld [vmem:[%s1 + $0x38] sm:$0xf]
        %v337 = vld [vmem:[%s1 + $0x3c] sm:$0xf]
        %v338 = vld [vmem:[%s2] sm:$0x1]
        %v340 = vlaneseq
        %v341 = vshrl.u32 %v340, 7
        %v342 = vsub.s32 0, %v341
        %v343 = vrot.slane %v338, %v342
        %v473 = vunpack.c.l.b16 %v194
        %v474 = vunpack.c.l.b16 %v195
        %v475 = vunpack.c.l.b16 %v196
        %v476 = vunpack.c.l.b16 %v197
        %v477 = vunpack.c.l.b16 %v198
        %v478 = vunpack.c.l.b16 %v199
        %v479 = vunpack.c.l.b16 %v200
        %v480 = vunpack.c.l.b16 %v201
        %v481 = vunpack.c.l.b16 %v202
        %v482 = vunpack.c.l.b16 %v203
        %v483 = vunpack.c.l.b16 %v204
        %v484 = vunpack.c.l.b16 %v205
        %v485 = vunpack.c.l.b16 %v206
        %v486 = vunpack.c.l.b16 %v207
        %v487 = vunpack.c.l.b16 %v208
        %v488 = vunpack.c.l.b16 %v209
        %v489 = vunpack.c.l.b16 %v210
        %v490 = vunpack.c.l.b16 %v211
        %v491 = vunpack.c.l.b16 %v212
        %v492 = vunpack.c.l.b16 %v213
        %v493 = vunpack.c.l.b16 %v214
        %v494 = vunpack.c.l.b16 %v215
        %v495 = vunpack.c.l.b16 %v216
        %v496 = vunpack.c.l.b16 %v217
        %v497 = vunpack.c.l.b16 %v218
        %v498 = vunpack.c.l.b16 %v219
        %v499 = vunpack.c.l.b16 %v220
        %v500 = vunpack.c.l.b16 %v221
        %v501 = vunpack.c.l.b16 %v222
        %v502 = vunpack.c.l.b16 %v223
        %v503 = vunpack.c.l.b16 %v224
        %v504 = vunpack.c.l.b16 %v225
        %v505 = vunpack.c.l.b16 %v226
        %v506 = vunpack.c.l.b16 %v227
        %v507 = vunpack.c.l.b16 %v228
        %v508 = vunpack.c.l.b16 %v229
        %v509 = vunpack.c.l.b16 %v230
        %v510 = vunpack.c.l.b16 %v231
        %v511 = vunpack.c.l.b16 %v232
        %v512 = vunpack.c.l.b16 %v233
        %v513 = vunpack.c.l.b16 %v234
        %v514 = vunpack.c.l.b16 %v235
        %v515 = vunpack.c.l.b16 %v236
        %v516 = vunpack.c.l.b16 %v237
        %v517 = vunpack.c.l.b16 %v238
        %v518 = vunpack.c.l.b16 %v239
        %v519 = vunpack.c.l.b16 %v240
        %v520 = vunpack.c.l.b16 %v241
        %v521 = vunpack.c.l.b16 %v242
        %v522 = vunpack.c.l.b16 %v243
        %v523 = vunpack.c.l.b16 %v244
        %v524 = vunpack.c.l.b16 %v245
        %v525 = vunpack.c.l.b16 %v246
        %v526 = vunpack.c.l.b16 %v247
        %v527 = vunpack.c.l.b16 %v248
        %v528 = vunpack.c.l.b16 %v249
        %v529 = vunpack.c.l.b16 %v250
        %v530 = vunpack.c.l.b16 %v251
        %v531 = vunpack.c.l.b16 %v252
        %v532 = vunpack.c.l.b16 %v253
        %v533 = vunpack.c.l.b16 %v254
        %v534 = vunpack.c.l.b16 %v255
        %v535 = vunpack.c.l.b16 %v256
        %v536 = vunpack.c.l.b16 %v257
        %v537 = vunpack.c.l.b16 %v258
        %v538 = vunpack.c.l.b16 %v259
        %v539 = vunpack.c.l.b16 %v260
        %v540 = vunpack.c.l.b16 %v261
        %v541 = vunpack.c.l.b16 %v262
        %v542 = vunpack.c.l.b16 %v263
        %v543 = vunpack.c.l.b16 %v264
        %v544 = vunpack.c.l.b16 %v265
        %v545 = vunpack.c.l.b16 %v266
        %v546 = vunpack.c.l.b16 %v267
        %v547 = vunpack.c.l.b16 %v268
        %v548 = vunpack.c.l.b16 %v269
        %v549 = vunpack.c.l.b16 %v270
        %v550 = vunpack.c.l.b16 %v271
        %v551 = vunpack.c.l.b16 %v272
        %v552 = vunpack.c.l.b16 %v273
        %v553 = vunpack.c.l.b16 %v274
        %v554 = vunpack.c.l.b16 %v275
        %v555 = vunpack.c.l.b16 %v276
        %v556 = vunpack.c.l.b16 %v277
        %v557 = vunpack.c.l.b16 %v278
        %v558 = vunpack.c.l.b16 %v279
        %v559 = vunpack.c.l.b16 %v280
        %v560 = vunpack.c.l.b16 %v281
        %v561 = vunpack.c.l.b16 %v282
        %v562 = vunpack.c.l.b16 %v283
        %v563 = vunpack.c.l.b16 %v284
        %v564 = vunpack.c.l.b16 %v285
        %v565 = vunpack.c.l.b16 %v286
        %v566 = vunpack.c.l.b16 %v287
        %v567 = vunpack.c.l.b16 %v288
        %v568 = vunpack.c.l.b16 %v289
        %v569 = vunpack.c.l.b16 %v290
        %v570 = vunpack.c.l.b16 %v291
        %v571 = vunpack.c.l.b16 %v292
        %v572 = vunpack.c.l.b16 %v293
        %v573 = vunpack.c.l.b16 %v294
        %v574 = vunpack.c.l.b16 %v295
        %v575 = vunpack.c.l.b16 %v296
        %v576 = vunpack.c.l.b16 %v297
        %v577 = vunpack.c.l.b16 %v298
        %v578 = vunpack.c.l.b16 %v299
        %v579 = vunpack.c.l.b16 %v300
        %v580 = vunpack.c.l.b16 %v301
        %v581 = vunpack.c.l.b16 %v302
        %v582 = vunpack.c.l.b16 %v303
        %v583 = vunpack.c.l.b16 %v304
        %v584 = vunpack.c.l.b16 %v305
        %v585 = vunpack.c.l.b16 %v306
        %v586 = vunpack.c.l.b16 %v307
        %v587 = vunpack.c.l.b16 %v308
        %v588 = vunpack.c.l.b16 %v309
        %v589 = vunpack.c.l.b16 %v310
        %v590 = vunpack.c.l.b16 %v311
        %v591 = vunpack.c.l.b16 %v312
        %v592 = vunpack.c.l.b16 %v313
        %v593 = vunpack.c.l.b16 %v314
        %v594 = vunpack.c.l.b16 %v315
        %v595 = vunpack.c.l.b16 %v316
        %v596 = vunpack.c.l.b16 %v317
        %v597 = vunpack.c.l.b16 %v318
        %v598 = vunpack.c.l.b16 %v319
        %v599 = vunpack.c.l.b16 %v320
        %v600 = vunpack.c.l.b16 %v321
        %v601 = vpack.c.b16 %v474, %v473
        %v602 = vpack.c.b16 %v476, %v475
        %v603 = vpack.c.b16 %v478, %v477
        %v604 = vpack.c.b16 %v480, %v479
        %v605 = vpack.c.b16 %v482, %v481
        %v606 = vpack.c.b16 %v484, %v483
        %v607 = vpack.c.b16 %v486, %v485
        %v608 = vpack.c.b16 %v488, %v487
        %v609 = vpack.c.b16 %v490, %v489
        %v610 = vpack.c.b16 %v492, %v491
        %v611 = vpack.c.b16 %v494, %v493
        %v612 = vpack.c.b16 %v496, %v495
        %v613 = vpack.c.b16 %v498, %v497
        %v614 = vpack.c.b16 %v500, %v499
        %v615 = vpack.c.b16 %v502, %v501
        %v616 = vpack.c.b16 %v504, %v503
        %v617 = vpack.c.b16 %v506, %v505
        %v618 = vpack.c.b16 %v508, %v507
        %v619 = vpack.c.b16 %v510, %v509
        %v620 = vpack.c.b16 %v512, %v511
        %v621 = vpack.c.b16 %v514, %v513
        %v622 = vpack.c.b16 %v516, %v515
        %v623 = vpack.c.b16 %v518, %v517
        %v624 = vpack.c.b16 %v520, %v519
        %v625 = vpack.c.b16 %v522, %v521
        %v626 = vpack.c.b16 %v524, %v523
        %v627 = vpack.c.b16 %v526, %v525
        %v628 = vpack.c.b16 %v528, %v527
        %v629 = vpack.c.b16 %v530, %v529
        %v630 = vpack.c.b16 %v532, %v531
        %v631 = vpack.c.b16 %v534, %v533
        %v632 = vpack.c.b16 %v536, %v535
        %v633 = vpack.c.b16 %v538, %v537
        %v634 = vpack.c.b16 %v540, %v539
        %v635 = vpack.c.b16 %v542, %v541
        %v636 = vpack.c.b16 %v544, %v543
        %v637 = vpack.c.b16 %v546, %v545
        %v638 = vpack.c.b16 %v548, %v547
        %v639 = vpack.c.b16 %v550, %v549
        %v640 = vpack.c.b16 %v552, %v551
        %v641 = vpack.c.b16 %v554, %v553
        %v642 = vpack.c.b16 %v556, %v555
        %v643 = vpack.c.b16 %v558, %v557
        %v644 = vpack.c.b16 %v560, %v559
        %v645 = vpack.c.b16 %v562, %v561
        %v646 = vpack.c.b16 %v564, %v563
        %v647 = vpack.c.b16 %v566, %v565
        %v648 = vpack.c.b16 %v568, %v567
        %v649 = vpack.c.b16 %v570, %v569
        %v650 = vpack.c.b16 %v572, %v571
        %v651 = vpack.c.b16 %v574, %v573
        %v652 = vpack.c.b16 %v576, %v575
        %v653 = vpack.c.b16 %v578, %v577
        %v654 = vpack.c.b16 %v580, %v579
        %v655 = vpack.c.b16 %v582, %v581
        %v656 = vpack.c.b16 %v584, %v583
        %v657 = vpack.c.b16 %v586, %v585
        %v658 = vpack.c.b16 %v588, %v587
        %v659 = vpack.c.b16 %v590, %v589
        %v660 = vpack.c.b16 %v592, %v591
        %v661 = vpack.c.b16 %v594, %v593
        %v662 = vpack.c.b16 %v596, %v595
        %v663 = vpack.c.b16 %v598, %v597
        %v664 = vpack.c.b16 %v600, %v599
        %v745 = vunpack.c.l.b16 %v322
        %v746 = vunpack.c.l.b16 %v323
        %v747 = vunpack.c.l.b16 %v324
        %v748 = vunpack.c.l.b16 %v325
        %v749 = vunpack.c.l.b16 %v326
        %v750 = vunpack.c.l.b16 %v327
        %v751 = vunpack.c.l.b16 %v328
        %v752 = vunpack.c.l.b16 %v329
        %v753 = vunpack.c.l.b16 %v330
        %v754 = vunpack.c.l.b16 %v331
        %v755 = vunpack.c.l.b16 %v332
        %v756 = vunpack.c.l.b16 %v333
        %v757 = vunpack.c.l.b16 %v334
        %v758 = vunpack.c.l.b16 %v335
        %v759 = vunpack.c.l.b16 %v336
        %v760 = vunpack.c.l.b16 %v337
        %v761 = vpack.c.b16 %v746, %v745
        %v762 = vpack.c.b16 %v748, %v747
        %v763 = vpack.c.b16 %v750, %v749
        %v764 = vpack.c.b16 %v752, %v751
        %v765 = vpack.c.b16 %v754, %v753
        %v766 = vpack.c.b16 %v756, %v755
        %v767 = vpack.c.b16 %v758, %v757
        %v768 = vpack.c.b16 %v760, %v759
        %777 = vmatprep.subr.bf16.mxu0 0
        %778 = vmatpush1.bf16.msra.mxu0 %v761
        %779 = vmatprep.subr.bf16.mxu0 0
        %780 = vmatpush1.bf16.msra.mxu0 %v762
        %781 = vmatprep.subr.bf16.mxu0 0
        %782 = vmatpush1.bf16.msra.mxu0 %v763
        %783 = vmatprep.subr.bf16.mxu0 0
        %784 = vmatpush1.bf16.msra.mxu0 %v764
        %785 = vmatprep.subr.bf16.mxu0 0
        %786 = vmatpush1.bf16.msra.mxu0 %v765
        %787 = vmatprep.subr.bf16.mxu0 0
        %788 = vmatpush1.bf16.msra.mxu0 %v766
        %789 = vmatprep.subr.bf16.mxu0 0
        %790 = vmatpush1.bf16.msra.mxu0 %v767
        %791 = vmatprep.subr.bf16.mxu0 0
        %792 = vmatpush1.bf16.msra.mxu0 %v768
        %793 = vmatprep.subr.bf16.mxu0 0
        %794 = vmatpush1.bf16.msra.mxu0 0
        %795 = vmatprep.subr.bf16.mxu0 0
        %796 = vmatpush1.bf16.msra.mxu0 0
        %797 = vmatprep.subr.bf16.mxu0 0
        %798 = vmatpush1.bf16.msra.mxu0 0
        %799 = vmatprep.subr.bf16.mxu0 0
        %800 = vmatpush1.bf16.msra.mxu0 0
        %801 = vmatprep.subr.bf16.mxu0 0
        %802 = vmatpush1.bf16.msra.mxu0 0
        %803 = vmatprep.subr.bf16.mxu0 0
        %804 = vmatpush1.bf16.msra.mxu0 0
        %805 = vmatprep.subr.bf16.mxu0 0
        %806 = vmatpush1.bf16.msra.mxu0 0
        %807 = vmatprep.subr.bf16.mxu0 0
        %808 = vmatpush1.bf16.msra.mxu0 0
        %809 = vmatprep.mubr.bf16.mxu0 0
        %810 = vmatmul.mubr.bf16.gmra.mrb[0].mxu0 %v601
        %v811 = vpop.f32.mrb[0].mxu0
        %v812 = vadd.f32 %v343, %v811
        %v813 = vpop.f32.mrb[0].mxu0
        %v814 = vpop.f32.mrb[0].mxu0
        %v815 = vadd.f32 %v343, %v814
        %v816 = vpop.f32.mrb[0].mxu0
        %817 = vmatprep.mubr.bf16.mxu0 0
        %818 = vmatmul.mubr.bf16.gmra.mrb[0].mxu0 %v602
        %v819 = vpop.f32.mrb[0].mxu0
        %v820 = vadd.f32 %v343, %v819
        %v821 = vpop.f32.mrb[0].mxu0
        %v822 = vpop.f32.mrb[0].mxu0
        %v823 = vadd.f32 %v343, %v822
        %v824 = vpop.f32.mrb[0].mxu0
        %825 = vmatprep.mubr.bf16.mxu0 0
        %826 = vmatmul.mubr.bf16.gmra.mrb[0].mxu0 %v603
        %v827 = vpop.f32.mrb[0].mxu0
        %v828 = vadd.f32 %v343, %v827
        %v829 = vpop.f32.mrb[0].mxu0
        %v830 = vpop.f32.mrb[0].mxu0
        %v831 = vadd.f32 %v343, %v830
        %v832 = vpop.f32.mrb[0].mxu0
        %833 = vmatprep.mubr.bf16.mxu0 0
        %834 = vmatmul.mubr.bf16.gmra.mrb[0].mxu0 %v604
        %v835 = vpop.f32.mrb[0].mxu0
        %v836 = vadd.f32 %v343, %v835
        %v837 = vpop.f32.mrb[0].mxu0
        %v838 = vpop.f32.mrb[0].mxu0
        %v839 = vadd.f32 %v343, %v838
        %v840 = vpop.f32.mrb[0].mxu0
        %841 = vmatprep.mubr.bf16.mxu0 0
        %842 = vmatmul.mubr.bf16.gmra.mrb[0].mxu0 %v605
        %v843 = vpop.f32.mrb[0].mxu0
        %v844 = vadd.f32 %v343, %v843
        %v845 = vpop.f32.mrb[0].mxu0
        %v846 = vpop.f32.mrb[0].mxu0
        %v847 = vadd.f32 %v343, %v846
        %v848 = vpop.f32.mrb[0].mxu0
        %849 = vmatprep.mubr.bf16.mxu0 0
        %850 = vmatmul.mubr.bf16.gmra.mrb[0].mxu0 %v606
        %v851 = vpop.f32.mrb[0].mxu0
        %v852 = vadd.f32 %v343, %v851
        %v853 = vpop.f32.mrb[0].mxu0
        %v854 = vpop.f32.mrb[0].mxu0
        %v855 = vadd.f32 %v343, %v854
        %v856 = vpop.f32.mrb[0].mxu0
        %857 = vmatprep.mubr.bf16.mxu0 0
        %858 = vmatmul.mubr.bf16.gmra.mrb[0].mxu0 %v607
        %v859 = vpop.f32.mrb[0].mxu0
        %v860 = vadd.f32 %v343, %v859
        %v861 = vpop.f32.mrb[0].mxu0
        %v862 = vpop.f32.mrb[0].mxu0
        %v863 = vadd.f32 %v343, %v862
        %v864 = vpop.f32.mrb[0].mxu0
        %865 = vmatprep.mubr.bf16.mxu0 0
        %866 = vmatmul.mubr.bf16.gmra.mrb[0].mxu0 %v608
        %v867 = vpop.f32.mrb[0].mxu0
        %v868 = vadd.f32 %v343, %v867
        %v869 = vpop.f32.mrb[0].mxu0
        %v870 = vpop.f32.mrb[0].mxu0
        %v871 = vadd.f32 %v343, %v870
        %v872 = vpop.f32.mrb[0].mxu0
        %873 = vmatprep.mubr.bf16.mxu0 0
        %874 = vmatmul.mubr.bf16.gmra.mrb[0].mxu0 %v609
        %v875 = vpop.f32.mrb[0].mxu0
        %v876 = vadd.f32 %v343, %v875
        %v877 = vpop.f32.mrb[0].mxu0
        %v878 = vpop.f32.mrb[0].mxu0
        %v879 = vadd.f32 %v343, %v878
        %v880 = vpop.f32.mrb[0].mxu0
        %881 = vmatprep.mubr.bf16.mxu0 0
        %882 = vmatmul.mubr.bf16.gmra.mrb[0].mxu0 %v610
        %v883 = vpop.f32.mrb[0].mxu0
        %v884 = vadd.f32 %v343, %v883
        %v885 = vpop.f32.mrb[0].mxu0
        %v886 = vpop.f32.mrb[0].mxu0
        %v887 = vadd.f32 %v343, %v886
        %v888 = vpop.f32.mrb[0].mxu0
        %889 = vmatprep.mubr.bf16.mxu0 0
        %890 = vmatmul.mubr.bf16.gmra.mrb[0].mxu0 %v611
        %v891 = vpop.f32.mrb[0].mxu0
        %v892 = vadd.f32 %v343, %v891
        %v893 = vpop.f32.mrb[0].mxu0
        %v894 = vpop.f32.mrb[0].mxu0
        %v895 = vadd.f32 %v343, %v894
        %v896 = vpop.f32.mrb[0].mxu0
        %897 = vmatprep.mubr.bf16.mxu0 0
        %898 = vmatmul.mubr.bf16.gmra.mrb[0].mxu0 %v612
        %v899 = vpop.f32.mrb[0].mxu0
        %v900 = vadd.f32 %v343, %v899
        %v901 = vpop.f32.mrb[0].mxu0
        %v902 = vpop.f32.mrb[0].mxu0
        %v903 = vadd.f32 %v343, %v902
        %v904 = vpop.f32.mrb[0].mxu0
        %905 = vmatprep.mubr.bf16.mxu0 0
        %906 = vmatmul.mubr.bf16.gmra.mrb[0].mxu0 %v613
        %v907 = vpop.f32.mrb[0].mxu0
        %v908 = vadd.f32 %v343, %v907
        %v909 = vpop.f32.mrb[0].mxu0
        %v910 = vpop.f32.mrb[0].mxu0
        %v911 = vadd.f32 %v343, %v910
        %v912 = vpop.f32.mrb[0].mxu0
        %913 = vmatprep.mubr.bf16.mxu0 0
        %914 = vmatmul.mubr.bf16.gmra.mrb[0].mxu0 %v614
        %v915 = vpop.f32.mrb[0].mxu0
        %v916 = vadd.f32 %v343, %v915
        %v917 = vpop.f32.mrb[0].mxu0
        %v918 = vpop.f32.mrb[0].mxu0
        %v919 = vadd.f32 %v343, %v918
        %v920 = vpop.f32.mrb[0].mxu0
        %921 = vmatprep.mubr.bf16.mxu0 0
        %922 = vmatmul.mubr.bf16.gmra.mrb[0].mxu0 %v615
        %v923 = vpop.f32.mrb[0].mxu0
        %v924 = vadd.f32 %v343, %v923
        %v925 = vpop.f32.mrb[0].mxu0
        %v926 = vpop.f32.mrb[0].mxu0
        %v927 = vadd.f32 %v343, %v926
        %v928 = vpop.f32.mrb[0].mxu0
        %929 = vmatprep.mubr.bf16.mxu0 0
        %930 = vmatmul.mubr.bf16.gmra.mrb[0].mxu0 %v616
        %v931 = vpop.f32.mrb[0].mxu0
        %v932 = vadd.f32 %v343, %v931
        %v933 = vpop.f32.mrb[0].mxu0
        %v934 = vpop.f32.mrb[0].mxu0
        %v935 = vadd.f32 %v343, %v934
        %v936 = vpop.f32.mrb[0].mxu0
        %937 = vmatprep.mubr.bf16.mxu0 0
        %938 = vmatmul.mubr.bf16.gmra.mrb[0].mxu0 %v617
        %v939 = vpop.f32.mrb[0].mxu0
        %v940 = vadd.f32 %v343, %v939
        %v941 = vpop.f32.mrb[0].mxu0
        %v942 = vpop.f32.mrb[0].mxu0
        %v943 = vadd.f32 %v343, %v942
        %v944 = vpop.f32.mrb[0].mxu0
        %945 = vmatprep.mubr.bf16.mxu0 0
        %946 = vmatmul.mubr.bf16.gmra.mrb[0].mxu0 %v618
        %v947 = vpop.f32.mrb[0].mxu0
        %v948 = vadd.f32 %v343, %v947
        %v949 = vpop.f32.mrb[0].mxu0
        %v950 = vpop.f32.mrb[0].mxu0
        %v951 = vadd.f32 %v343, %v950
        %v952 = vpop.f32.mrb[0].mxu0
        %953 = vmatprep.mubr.bf16.mxu0 0
        %954 = vmatmul.mubr.bf16.gmra.mrb[0].mxu0 %v619
        %v955 = vpop.f32.mrb[0].mxu0
        %v956 = vadd.f32 %v343, %v955
        %v957 = vpop.f32.mrb[0].mxu0
        %v958 = vpop.f32.mrb[0].mxu0
        %v959 = vadd.f32 %v343, %v958
        %v960 = vpop.f32.mrb[0].mxu0
        %961 = vmatprep.mubr.bf16.mxu0 0
        %962 = vmatmul.mubr.bf16.gmra.mrb[0].mxu0 %v620
        %v963 = vpop.f32.mrb[0].mxu0
        %v964 = vadd.f32 %v343, %v963
        %v965 = vpop.f32.mrb[0].mxu0
        %v966 = vpop.f32.mrb[0].mxu0
        %v967 = vadd.f32 %v343, %v966
        %v968 = vpop.f32.mrb[0].mxu0
        %969 = vmatprep.mubr.bf16.mxu0 0
        %970 = vmatmul.mubr.bf16.gmra.mrb[0].mxu0 %v621
        %v971 = vpop.f32.mrb[0].mxu0
        %v972 = vadd.f32 %v343, %v971
        %v973 = vpop.f32.mrb[0].mxu0
        %v974 = vpop.f32.mrb[0].mxu0
        %v975 = vadd.f32 %v343, %v974
        %v976 = vpop.f32.mrb[0].mxu0
        %977 = vmatprep.mubr.bf16.mxu0 0
        %978 = vmatmul.mubr.bf16.gmra.mrb[0].mxu0 %v622
        %v979 = vpop.f32.mrb[0].mxu0
        %v980 = vadd.f32 %v343, %v979
        %v981 = vpop.f32.mrb[0].mxu0
        %v982 = vpop.f32.mrb[0].mxu0
        %v983 = vadd.f32 %v343, %v982
        %v984 = vpop.f32.mrb[0].mxu0
        %985 = vmatprep.mubr.bf16.mxu0 0
        %986 = vmatmul.mubr.bf16.gmra.mrb[0].mxu0 %v623
        %v987 = vpop.f32.mrb[0].mxu0
        %v988 = vadd.f32 %v343, %v987
        %v989 = vpop.f32.mrb[0].mxu0
        %v990 = vpop.f32.mrb[0].mxu0
        %v991 = vadd.f32 %v343, %v990
        %v992 = vpop.f32.mrb[0].mxu0
        %993 = vmatprep.mubr.bf16.mxu0 0
        %994 = vmatmul.mubr.bf16.gmra.mrb[0].mxu0 %v624
        %v995 = vpop.f32.mrb[0].mxu0
        %v996 = vadd.f32 %v343, %v995
        %v997 = vpop.f32.mrb[0].mxu0
        %v998 = vpop.f32.mrb[0].mxu0
        %v999 = vadd.f32 %v343, %v998
        %v1000 = vpop.f32.mrb[0].mxu0
        %1001 = vmatprep.mubr.bf16.mxu0 0
        %1002 = vmatmul.mubr.bf16.gmra.mrb[0].mxu0 %v625
        %v1003 = vpop.f32.mrb[0].mxu0
        %v1004 = vadd.f32 %v343, %v1003
        %v1005 = vpop.f32.mrb[0].mxu0
        %v1006 = vpop.f32.mrb[0].mxu0
        %v1007 = vadd.f32 %v343, %v1006
        %v1008 = vpop.f32.mrb[0].mxu0
        %1009 = vmatprep.mubr.bf16.mxu0 0
        %1010 = vmatmul.mubr.bf16.gmra.mrb[0].mxu0 %v626
        %v1011 = vpop.f32.mrb[0].mxu0
        %v1012 = vadd.f32 %v343, %v1011
        %v1013 = vpop.f32.mrb[0].mxu0
        %v1014 = vpop.f32.mrb[0].mxu0
        %v1015 = vadd.f32 %v343, %v1014
        %v1016 = vpop.f32.mrb[0].mxu0
        %1017 = vmatprep.mubr.bf16.mxu0 0
        %1018 = vmatmul.mubr.bf16.gmra.mrb[0].mxu0 %v627
        %v1019 = vpop.f32.mrb[0].mxu0
        %v1020 = vadd.f32 %v343, %v1019
        %v1021 = vpop.f32.mrb[0].mxu0
        %v1022 = vpop.f32.mrb[0].mxu0
        %v1023 = vadd.f32 %v343, %v1022
        %v1024 = vpop.f32.mrb[0].mxu0
        %1025 = vmatprep.mubr.bf16.mxu0 0
        %1026 = vmatmul.mubr.bf16.gmra.mrb[0].mxu0 %v628
        %v1027 = vpop.f32.mrb[0].mxu0
        %v1028 = vadd.f32 %v343, %v1027
        %v1029 = vpop.f32.mrb[0].mxu0
        %v1030 = vpop.f32.mrb[0].mxu0
        %v1031 = vadd.f32 %v343, %v1030
        %v1032 = vpop.f32.mrb[0].mxu0
        %1033 = vmatprep.mubr.bf16.mxu0 0
        %1034 = vmatmul.mubr.bf16.gmra.mrb[0].mxu0 %v629
        %v1035 = vpop.f32.mrb[0].mxu0
        %v1036 = vadd.f32 %v343, %v1035
        %v1037 = vpop.f32.mrb[0].mxu0
        %v1038 = vpop.f32.mrb[0].mxu0
        %v1039 = vadd.f32 %v343, %v1038
        %v1040 = vpop.f32.mrb[0].mxu0
        %1041 = vmatprep.mubr.bf16.mxu0 0
        %1042 = vmatmul.mubr.bf16.gmra.mrb[0].mxu0 %v630
        %v1043 = vpop.f32.mrb[0].mxu0
        %v1044 = vadd.f32 %v343, %v1043
        %v1045 = vpop.f32.mrb[0].mxu0
        %v1046 = vpop.f32.mrb[0].mxu0
        %v1047 = vadd.f32 %v343, %v1046
        %v1048 = vpop.f32.mrb[0].mxu0
        %1049 = vmatprep.mubr.bf16.mxu0 0
        %1050 = vmatmul.mubr.bf16.gmra.mrb[0].mxu0 %v631
        %v1051 = vpop.f32.mrb[0].mxu0
        %v1052 = vadd.f32 %v343, %v1051
        %v1053 = vpop.f32.mrb[0].mxu0
        %v1054 = vpop.f32.mrb[0].mxu0
        %v1055 = vadd.f32 %v343, %v1054
        %v1056 = vpop.f32.mrb[0].mxu0
        %1057 = vmatprep.mubr.bf16.mxu0 0
        %1058 = vmatmul.mubr.bf16.gmra.mrb[0].mxu0 %v632
        %v1059 = vpop.f32.mrb[0].mxu0
        %v1060 = vadd.f32 %v343, %v1059
        %v1061 = vpop.f32.mrb[0].mxu0
        %v1062 = vpop.f32.mrb[0].mxu0
        %v1063 = vadd.f32 %v343, %v1062
        %v1064 = vpop.f32.mrb[0].mxu0
        %1065 = vmatprep.mubr.bf16.mxu0 0
        %1066 = vmatmul.mubr.bf16.gmra.mrb[0].mxu0 %v633
        %v1067 = vpop.f32.mrb[0].mxu0
        %v1068 = vadd.f32 %v343, %v1067
        %v1069 = vpop.f32.mrb[0].mxu0
        %v1070 = vpop.f32.mrb[0].mxu0
        %v1071 = vadd.f32 %v343, %v1070
        %v1072 = vpop.f32.mrb[0].mxu0
        %1073 = vmatprep.mubr.bf16.mxu0 0
        %1074 = vmatmul.mubr.bf16.gmra.mrb[0].mxu0 %v634
        %v1075 = vpop.f32.mrb[0].mxu0
        %v1076 = vadd.f32 %v343, %v1075
        %v1077 = vpop.f32.mrb[0].mxu0
        %v1078 = vpop.f32.mrb[0].mxu0
        %v1079 = vadd.f32 %v343, %v1078
        %v1080 = vpop.f32.mrb[0].mxu0
        %1081 = vmatprep.mubr.bf16.mxu0 0
        %1082 = vmatmul.mubr.bf16.gmra.mrb[0].mxu0 %v635
        %v1083 = vpop.f32.mrb[0].mxu0
        %v1084 = vadd.f32 %v343, %v1083
        %v1085 = vpop.f32.mrb[0].mxu0
        %v1086 = vpop.f32.mrb[0].mxu0
        %v1087 = vadd.f32 %v343, %v1086
        %v1088 = vpop.f32.mrb[0].mxu0
        %1089 = vmatprep.mubr.bf16.mxu0 0
        %1090 = vmatmul.mubr.bf16.gmra.mrb[0].mxu0 %v636
        %v1091 = vpop.f32.mrb[0].mxu0
        %v1092 = vadd.f32 %v343, %v1091
        %v1093 = vpop.f32.mrb[0].mxu0
        %v1094 = vpop.f32.mrb[0].mxu0
        %v1095 = vadd.f32 %v343, %v1094
        %v1096 = vpop.f32.mrb[0].mxu0
        %1097 = vmatprep.mubr.bf16.mxu0 0
        %1098 = vmatmul.mubr.bf16.gmra.mrb[0].mxu0 %v637
        %v1099 = vpop.f32.mrb[0].mxu0
        %v1100 = vadd.f32 %v343, %v1099
        %v1101 = vpop.f32.mrb[0].mxu0
        %v1102 = vpop.f32.mrb[0].mxu0
        %v1103 = vadd.f32 %v343, %v1102
        %v1104 = vpop.f32.mrb[0].mxu0
        %1105 = vmatprep.mubr.bf16.mxu0 0
        %1106 = vmatmul.mubr.bf16.gmra.mrb[0].mxu0 %v638
        %v1107 = vpop.f32.mrb[0].mxu0
        %v1108 = vadd.f32 %v343, %v1107
        %v1109 = vpop.f32.mrb[0].mxu0
        %v1110 = vpop.f32.mrb[0].mxu0
        %v1111 = vadd.f32 %v343, %v1110
        %v1112 = vpop.f32.mrb[0].mxu0
        %1113 = vmatprep.mubr.bf16.mxu0 0
        %1114 = vmatmul.mubr.bf16.gmra.mrb[0].mxu0 %v639
        %v1115 = vpop.f32.mrb[0].mxu0
        %v1116 = vadd.f32 %v343, %v1115
        %v1117 = vpop.f32.mrb[0].mxu0
        %v1118 = vpop.f32.mrb[0].mxu0
        %v1119 = vadd.f32 %v343, %v1118
        %v1120 = vpop.f32.mrb[0].mxu0
        %1121 = vmatprep.mubr.bf16.mxu0 0
        %1122 = vmatmul.mubr.bf16.gmra.mrb[0].mxu0 %v640
        %v1123 = vpop.f32.mrb[0].mxu0
        %v1124 = vadd.f32 %v343, %v1123
        %v1125 = vpop.f32.mrb[0].mxu0
        %v1126 = vpop.f32.mrb[0].mxu0
        %v1127 = vadd.f32 %v343, %v1126
        %v1128 = vpop.f32.mrb[0].mxu0
        %1129 = vmatprep.mubr.bf16.mxu0 0
        %1130 = vmatmul.mubr.bf16.gmra.mrb[0].mxu0 %v641
        %v1131 = vpop.f32.mrb[0].mxu0
        %v1132 = vadd.f32 %v343, %v1131
        %v1133 = vpop.f32.mrb[0].mxu0
        %v1134 = vpop.f32.mrb[0].mxu0
        %v1135 = vadd.f32 %v343, %v1134
        %v1136 = vpop.f32.mrb[0].mxu0
        %1137 = vmatprep.mubr.bf16.mxu0 0
        %1138 = vmatmul.mubr.bf16.gmra.mrb[0].mxu0 %v642
        %v1139 = vpop.f32.mrb[0].mxu0
        %v1140 = vadd.f32 %v343, %v1139
        %v1141 = vpop.f32.mrb[0].mxu0
        %v1142 = vpop.f32.mrb[0].mxu0
        %v1143 = vadd.f32 %v343, %v1142
        %v1144 = vpop.f32.mrb[0].mxu0
        %1145 = vmatprep.mubr.bf16.mxu0 0
        %1146 = vmatmul.mubr.bf16.gmra.mrb[0].mxu0 %v643
        %v1147 = vpop.f32.mrb[0].mxu0
        %v1148 = vadd.f32 %v343, %v1147
        %v1149 = vpop.f32.mrb[0].mxu0
        %v1150 = vpop.f32.mrb[0].mxu0
        %v1151 = vadd.f32 %v343, %v1150
        %v1152 = vpop.f32.mrb[0].mxu0
        %1153 = vmatprep.mubr.bf16.mxu0 0
        %1154 = vmatmul.mubr.bf16.gmra.mrb[0].mxu0 %v644
        %v1155 = vpop.f32.mrb[0].mxu0
        %v1156 = vadd.f32 %v343, %v1155
        %v1157 = vpop.f32.mrb[0].mxu0
        %v1158 = vpop.f32.mrb[0].mxu0
        %v1159 = vadd.f32 %v343, %v1158
        %v1160 = vpop.f32.mrb[0].mxu0
        %1161 = vmatprep.mubr.bf16.mxu0 0
        %1162 = vmatmul.mubr.bf16.gmra.mrb[0].mxu0 %v645
        %v1163 = vpop.f32.mrb[0].mxu0
        %v1164 = vadd.f32 %v343, %v1163
        %v1165 = vpop.f32.mrb[0].mxu0
        %v1166 = vpop.f32.mrb[0].mxu0
        %v1167 = vadd.f32 %v343, %v1166
        %v1168 = vpop.f32.mrb[0].mxu0
        %1169 = vmatprep.mubr.bf16.mxu0 0
        %1170 = vmatmul.mubr.bf16.gmra.mrb[0].mxu0 %v646
        %v1171 = vpop.f32.mrb[0].mxu0
        %v1172 = vadd.f32 %v343, %v1171
        %v1173 = vpop.f32.mrb[0].mxu0
        %v1174 = vpop.f32.mrb[0].mxu0
        %v1175 = vadd.f32 %v343, %v1174
        %v1176 = vpop.f32.mrb[0].mxu0
        %1177 = vmatprep.mubr.bf16.mxu0 0
        %1178 = vmatmul.mubr.bf16.gmra.mrb[0].mxu0 %v647
        %v1179 = vpop.f32.mrb[0].mxu0
        %v1180 = vadd.f32 %v343, %v1179
        %v1181 = vpop.f32.mrb[0].mxu0
        %v1182 = vpop.f32.mrb[0].mxu0
        %v1183 = vadd.f32 %v343, %v1182
        %v1184 = vpop.f32.mrb[0].mxu0
        %1185 = vmatprep.mubr.bf16.mxu0 0
        %1186 = vmatmul.mubr.bf16.gmra.mrb[0].mxu0 %v648
        %v1187 = vpop.f32.mrb[0].mxu0
        %v1188 = vadd.f32 %v343, %v1187
        %v1189 = vpop.f32.mrb[0].mxu0
        %v1190 = vpop.f32.mrb[0].mxu0
        %v1191 = vadd.f32 %v343, %v1190
        %v1192 = vpop.f32.mrb[0].mxu0
        %1193 = vmatprep.mubr.bf16.mxu0 0
        %1194 = vmatmul.mubr.bf16.gmra.mrb[0].mxu0 %v649
        %v1195 = vpop.f32.mrb[0].mxu0
        %v1196 = vadd.f32 %v343, %v1195
        %v1197 = vpop.f32.mrb[0].mxu0
        %v1198 = vpop.f32.mrb[0].mxu0
        %v1199 = vadd.f32 %v343, %v1198
        %v1200 = vpop.f32.mrb[0].mxu0
        %1201 = vmatprep.mubr.bf16.mxu0 0
        %1202 = vmatmul.mubr.bf16.gmra.mrb[0].mxu0 %v650
        %v1203 = vpop.f32.mrb[0].mxu0
        %v1204 = vadd.f32 %v343, %v1203
        %v1205 = vpop.f32.mrb[0].mxu0
        %v1206 = vpop.f32.mrb[0].mxu0
        %v1207 = vadd.f32 %v343, %v1206
        %v1208 = vpop.f32.mrb[0].mxu0
        %1209 = vmatprep.mubr.bf16.mxu0 0
        %1210 = vmatmul.mubr.bf16.gmra.mrb[0].mxu0 %v651
        %v1211 = vpop.f32.mrb[0].mxu0
        %v1212 = vadd.f32 %v343, %v1211
        %v1213 = vpop.f32.mrb[0].mxu0
        %v1214 = vpop.f32.mrb[0].mxu0
        %v1215 = vadd.f32 %v343, %v1214
        %v1216 = vpop.f32.mrb[0].mxu0
        %1217 = vmatprep.mubr.bf16.mxu0 0
        %1218 = vmatmul.mubr.bf16.gmra.mrb[0].mxu0 %v652
        %v1219 = vpop.f32.mrb[0].mxu0
        %v1220 = vadd.f32 %v343, %v1219
        %v1221 = vpop.f32.mrb[0].mxu0
        %v1222 = vpop.f32.mrb[0].mxu0
        %v1223 = vadd.f32 %v343, %v1222
        %v1224 = vpop.f32.mrb[0].mxu0
        %1225 = vmatprep.mubr.bf16.mxu0 0
        %1226 = vmatmul.mubr.bf16.gmra.mrb[0].mxu0 %v653
        %v1227 = vpop.f32.mrb[0].mxu0
        %v1228 = vadd.f32 %v343, %v1227
        %v1229 = vpop.f32.mrb[0].mxu0
        %v1230 = vpop.f32.mrb[0].mxu0
        %v1231 = vadd.f32 %v343, %v1230
        %v1232 = vpop.f32.mrb[0].mxu0
        %1233 = vmatprep.mubr.bf16.mxu0 0
        %1234 = vmatmul.mubr.bf16.gmra.mrb[0].mxu0 %v654
        %v1235 = vpop.f32.mrb[0].mxu0
        %v1236 = vadd.f32 %v343, %v1235
        %v1237 = vpop.f32.mrb[0].mxu0
        %v1238 = vpop.f32.mrb[0].mxu0
        %v1239 = vadd.f32 %v343, %v1238
        %v1240 = vpop.f32.mrb[0].mxu0
        %1241 = vmatprep.mubr.bf16.mxu0 0
        %1242 = vmatmul.mubr.bf16.gmra.mrb[0].mxu0 %v655
        %v1243 = vpop.f32.mrb[0].mxu0
        %v1244 = vadd.f32 %v343, %v1243
        %v1245 = vpop.f32.mrb[0].mxu0
        %v1246 = vpop.f32.mrb[0].mxu0
        %v1247 = vadd.f32 %v343, %v1246
        %v1248 = vpop.f32.mrb[0].mxu0
        %1249 = vmatprep.mubr.bf16.mxu0 0
        %1250 = vmatmul.mubr.bf16.gmra.mrb[0].mxu0 %v656
        %v1251 = vpop.f32.mrb[0].mxu0
        %v1252 = vadd.f32 %v343, %v1251
        %v1253 = vpop.f32.mrb[0].mxu0
        %v1254 = vpop.f32.mrb[0].mxu0
        %v1255 = vadd.f32 %v343, %v1254
        %v1256 = vpop.f32.mrb[0].mxu0
        %1257 = vmatprep.mubr.bf16.mxu0 0
        %1258 = vmatmul.mubr.bf16.gmra.mrb[0].mxu0 %v657
        %v1259 = vpop.f32.mrb[0].mxu0
        %v1260 = vadd.f32 %v343, %v1259
        %v1261 = vpop.f32.mrb[0].mxu0
        %v1262 = vpop.f32.mrb[0].mxu0
        %v1263 = vadd.f32 %v343, %v1262
        %v1264 = vpop.f32.mrb[0].mxu0
        %1265 = vmatprep.mubr.bf16.mxu0 0
        %1266 = vmatmul.mubr.bf16.gmra.mrb[0].mxu0 %v658
        %v1267 = vpop.f32.mrb[0].mxu0
        %v1268 = vadd.f32 %v343, %v1267
        %v1269 = vpop.f32.mrb[0].mxu0
        %v1270 = vpop.f32.mrb[0].mxu0
        %v1271 = vadd.f32 %v343, %v1270
        %v1272 = vpop.f32.mrb[0].mxu0
        %1273 = vmatprep.mubr.bf16.mxu0 0
        %1274 = vmatmul.mubr.bf16.gmra.mrb[0].mxu0 %v659
        %v1275 = vpop.f32.mrb[0].mxu0
        %v1276 = vadd.f32 %v343, %v1275
        %v1277 = vpop.f32.mrb[0].mxu0
        %v1278 = vpop.f32.mrb[0].mxu0
        %v1279 = vadd.f32 %v343, %v1278
        %v1280 = vpop.f32.mrb[0].mxu0
        %1281 = vmatprep.mubr.bf16.mxu0 0
        %1282 = vmatmul.mubr.bf16.gmra.mrb[0].mxu0 %v660
        %v1283 = vpop.f32.mrb[0].mxu0
        %v1284 = vadd.f32 %v343, %v1283
        %v1285 = vpop.f32.mrb[0].mxu0
        %v1286 = vpop.f32.mrb[0].mxu0
        %v1287 = vadd.f32 %v343, %v1286
        %v1288 = vpop.f32.mrb[0].mxu0
        %1289 = vmatprep.mubr.bf16.mxu0 0
        %1290 = vmatmul.mubr.bf16.gmra.mrb[0].mxu0 %v661
        %v1291 = vpop.f32.mrb[0].mxu0
        %v1292 = vadd.f32 %v343, %v1291
        %v1293 = vpop.f32.mrb[0].mxu0
        %v1294 = vpop.f32.mrb[0].mxu0
        %v1295 = vadd.f32 %v343, %v1294
        %v1296 = vpop.f32.mrb[0].mxu0
        %1297 = vmatprep.mubr.bf16.mxu0 0
        %1298 = vmatmul.mubr.bf16.gmra.mrb[0].mxu0 %v662
        %v1299 = vpop.f32.mrb[0].mxu0
        %v1300 = vadd.f32 %v343, %v1299
        %v1301 = vpop.f32.mrb[0].mxu0
        %v1302 = vpop.f32.mrb[0].mxu0
        %v1303 = vadd.f32 %v343, %v1302
        %v1304 = vpop.f32.mrb[0].mxu0
        %1305 = vmatprep.mubr.bf16.mxu0 0
        %1306 = vmatmul.mubr.bf16.gmra.mrb[0].mxu0 %v663
        %v1307 = vpop.f32.mrb[0].mxu0
        %v1308 = vadd.f32 %v343, %v1307
        %v1309 = vpop.f32.mrb[0].mxu0
        %v1310 = vpop.f32.mrb[0].mxu0
        %v1311 = vadd.f32 %v343, %v1310
        %v1312 = vpop.f32.mrb[0].mxu0
        %1313 = vmatprep.mubr.bf16.mxu0 0
        %1314 = vmatmul.mubr.bf16.gmra.mrb[0].mxu0 %v664
        %v1315 = vpop.f32.mrb[0].mxu0
        %v1316 = vadd.f32 %v343, %v1315
        %v1317 = vpop.f32.mrb[0].mxu0
        %v1318 = vpop.f32.mrb[0].mxu0
        %v1319 = vadd.f32 %v343, %v1318
        %v1320 = vpop.f32.mrb[0].mxu0
        %1321 = vdwg.mxu0
        %v1322 = vmax.f32 %v812, 0.0
        %v1323 = vmax.f32 %v815, 0.0
        %v1324 = vmax.f32 %v820, 0.0
        %v1325 = vmax.f32 %v823, 0.0
        %v1326 = vmax.f32 %v828, 0.0
        %v1327 = vmax.f32 %v831, 0.0
        %v1328 = vmax.f32 %v836, 0.0
        %v1329 = vmax.f32 %v839, 0.0
        %v1330 = vmax.f32 %v844, 0.0
        %v1331 = vmax.f32 %v847, 0.0
        %v1332 = vmax.f32 %v852, 0.0
        %v1333 = vmax.f32 %v855, 0.0
        %v1334 = vmax.f32 %v860, 0.0
        %v1335 = vmax.f32 %v863, 0.0
        %v1336 = vmax.f32 %v868, 0.0
        %v1337 = vmax.f32 %v871, 0.0
        %v1338 = vmax.f32 %v876, 0.0
        %v1339 = vmax.f32 %v879, 0.0
        %v1340 = vmax.f32 %v884, 0.0
        %v1341 = vmax.f32 %v887, 0.0
        %v1342 = vmax.f32 %v892, 0.0
        %v1343 = vmax.f32 %v895, 0.0
        %v1344 = vmax.f32 %v900, 0.0
        %v1345 = vmax.f32 %v903, 0.0
        %v1346 = vmax.f32 %v908, 0.0
        %v1347 = vmax.f32 %v911, 0.0
        %v1348 = vmax.f32 %v916, 0.0
        %v1349 = vmax.f32 %v919, 0.0
        %v1350 = vmax.f32 %v924, 0.0
        %v1351 = vmax.f32 %v927, 0.0
        %v1352 = vmax.f32 %v932, 0.0
        %v1353 = vmax.f32 %v935, 0.0
        %v1354 = vmax.f32 %v940, 0.0
        %v1355 = vmax.f32 %v943, 0.0
        %v1356 = vmax.f32 %v948, 0.0
        %v1357 = vmax.f32 %v951, 0.0
        %v1358 = vmax.f32 %v956, 0.0
        %v1359 = vmax.f32 %v959, 0.0
        %v1360 = vmax.f32 %v964, 0.0
        %v1361 = vmax.f32 %v967, 0.0
        %v1362 = vmax.f32 %v972, 0.0
        %v1363 = vmax.f32 %v975, 0.0
        %v1364 = vmax.f32 %v980, 0.0
        %v1365 = vmax.f32 %v983, 0.0
        %v1366 = vmax.f32 %v988, 0.0
        %v1367 = vmax.f32 %v991, 0.0
        %v1368 = vmax.f32 %v996, 0.0
        %v1369 = vmax.f32 %v999, 0.0
        %v1370 = vmax.f32 %v1004, 0.0
        %v1371 = vmax.f32 %v1007, 0.0
        %v1372 = vmax.f32 %v1012, 0.0
        %v1373 = vmax.f32 %v1015, 0.0
        %v1374 = vmax.f32 %v1020, 0.0
        %v1375 = vmax.f32 %v1023, 0.0
        %v1376 = vmax.f32 %v1028, 0.0
        %v1377 = vmax.f32 %v1031, 0.0
        %v1378 = vmax.f32 %v1036, 0.0
        %v1379 = vmax.f32 %v1039, 0.0
        %v1380 = vmax.f32 %v1044, 0.0
        %v1381 = vmax.f32 %v1047, 0.0
        %v1382 = vmax.f32 %v1052, 0.0
        %v1383 = vmax.f32 %v1055, 0.0
        %v1384 = vmax.f32 %v1060, 0.0
        %v1385 = vmax.f32 %v1063, 0.0
        %v1386 = vmax.f32 %v1068, 0.0
        %v1387 = vmax.f32 %v1071, 0.0
        %v1388 = vmax.f32 %v1076, 0.0
        %v1389 = vmax.f32 %v1079, 0.0
        %v1390 = vmax.f32 %v1084, 0.0
        %v1391 = vmax.f32 %v1087, 0.0
        %v1392 = vmax.f32 %v1092, 0.0
        %v1393 = vmax.f32 %v1095, 0.0
        %v1394 = vmax.f32 %v1100, 0.0
        %v1395 = vmax.f32 %v1103, 0.0
        %v1396 = vmax.f32 %v1108, 0.0
        %v1397 = vmax.f32 %v1111, 0.0
        %v1398 = vmax.f32 %v1116, 0.0
        %v1399 = vmax.f32 %v1119, 0.0
        %v1400 = vmax.f32 %v1124, 0.0
        %v1401 = vmax.f32 %v1127, 0.0
        %v1402 = vmax.f32 %v1132, 0.0
        %v1403 = vmax.f32 %v1135, 0.0
        %v1404 = vmax.f32 %v1140, 0.0
        %v1405 = vmax.f32 %v1143, 0.0
        %v1406 = vmax.f32 %v1148, 0.0
        %v1407 = vmax.f32 %v1151, 0.0
        %v1408 = vmax.f32 %v1156, 0.0
        %v1409 = vmax.f32 %v1159, 0.0
        %v1410 = vmax.f32 %v1164, 0.0
        %v1411 = vmax.f32 %v1167, 0.0
        %v1412 = vmax.f32 %v1172, 0.0
        %v1413 = vmax.f32 %v1175, 0.0
        %v1414 = vmax.f32 %v1180, 0.0
        %v1415 = vmax.f32 %v1183, 0.0
        %v1416 = vmax.f32 %v1188, 0.0
        %v1417 = vmax.f32 %v1191, 0.0
        %v1418 = vmax.f32 %v1196, 0.0
        %v1419 = vmax.f32 %v1199, 0.0
        %v1420 = vmax.f32 %v1204, 0.0
        %v1421 = vmax.f32 %v1207, 0.0
        %v1422 = vmax.f32 %v1212, 0.0
        %v1423 = vmax.f32 %v1215, 0.0
        %v1424 = vmax.f32 %v1220, 0.0
        %v1425 = vmax.f32 %v1223, 0.0
        %v1426 = vmax.f32 %v1228, 0.0
        %v1427 = vmax.f32 %v1231, 0.0
        %v1428 = vmax.f32 %v1236, 0.0
        %v1429 = vmax.f32 %v1239, 0.0
        %v1430 = vmax.f32 %v1244, 0.0
        %v1431 = vmax.f32 %v1247, 0.0
        %v1432 = vmax.f32 %v1252, 0.0
        %v1433 = vmax.f32 %v1255, 0.0
        %v1434 = vmax.f32 %v1260, 0.0
        %v1435 = vmax.f32 %v1263, 0.0
        %v1436 = vmax.f32 %v1268, 0.0
        %v1437 = vmax.f32 %v1271, 0.0
        %v1438 = vmax.f32 %v1276, 0.0
        %v1439 = vmax.f32 %v1279, 0.0
        %v1440 = vmax.f32 %v1284, 0.0
        %v1441 = vmax.f32 %v1287, 0.0
        %v1442 = vmax.f32 %v1292, 0.0
        %v1443 = vmax.f32 %v1295, 0.0
        %v1444 = vmax.f32 %v1300, 0.0
        %v1445 = vmax.f32 %v1303, 0.0
        %v1446 = vmax.f32 %v1308, 0.0
        %v1447 = vmax.f32 %v1311, 0.0
        %v1448 = vmax.f32 %v1316, 0.0
        %v1449 = vmax.f32 %v1319, 0.0
        %vm1450 = vcmask 261120
        %1451 = vst.msk [vmem:[%s191] sm:$0xff] %vm1450, %v1322
        %1452 = vst.msk [vmem:[%s191 + $0x8] sm:$0xff] %vm1450, %v1323
        %1453 = vst.msk [vmem:[%s191 + $0x10] sm:$0xff] %vm1450, %v1324
        %1454 = vst.msk [vmem:[%s191 + $0x18] sm:$0xff] %vm1450, %v1325
        %1455 = vst.msk [vmem:[%s191 + $0x20] sm:$0xff] %vm1450, %v1326
        %1456 = vst.msk [vmem:[%s191 + $0x28] sm:$0xff] %vm1450, %v1327
        %1457 = vst.msk [vmem:[%s191 + $0x30] sm:$0xff] %vm1450, %v1328
        %1458 = vst.msk [vmem:[%s191 + $0x38] sm:$0xff] %vm1450, %v1329
        %1459 = vst.msk [vmem:[%s191 + $0x40] sm:$0xff] %vm1450, %v1330
        %1460 = vst.msk [vmem:[%s191 + $0x48] sm:$0xff] %vm1450, %v1331
        %1461 = vst.msk [vmem:[%s191 + $0x50] sm:$0xff] %vm1450, %v1332
        %1462 = vst.msk [vmem:[%s191 + $0x58] sm:$0xff] %vm1450, %v1333
        %1463 = vst.msk [vmem:[%s191 + $0x60] sm:$0xff] %vm1450, %v1334
        %1464 = vst.msk [vmem:[%s191 + $0x68] sm:$0xff] %vm1450, %v1335
        %1465 = vst.msk [vmem:[%s191 + $0x70] sm:$0xff] %vm1450, %v1336
        %1466 = vst.msk [vmem:[%s191 + $0x78] sm:$0xff] %vm1450, %v1337
        %1467 = vst.msk [vmem:[%s191 + $0x80] sm:$0xff] %vm1450, %v1338
        %1468 = vst.msk [vmem:[%s191 + $0x88] sm:$0xff] %vm1450, %v1339
        %1469 = vst.msk [vmem:[%s191 + $0x90] sm:$0xff] %vm1450, %v1340
        %1470 = vst.msk [vmem:[%s191 + $0x98] sm:$0xff] %vm1450, %v1341
        %1471 = vst.msk [vmem:[%s191 + $0xa0] sm:$0xff] %vm1450, %v1342
        %1472 = vst.msk [vmem:[%s191 + $0xa8] sm:$0xff] %vm1450, %v1343
        %1473 = vst.msk [vmem:[%s191 + $0xb0] sm:$0xff] %vm1450, %v1344
        %1474 = vst.msk [vmem:[%s191 + $0xb8] sm:$0xff] %vm1450, %v1345
        %1475 = vst.msk [vmem:[%s191 + $0xc0] sm:$0xff] %vm1450, %v1346
        %1476 = vst.msk [vmem:[%s191 + $0xc8] sm:$0xff] %vm1450, %v1347
        %1477 = vst.msk [vmem:[%s191 + $0xd0] sm:$0xff] %vm1450, %v1348
        %1478 = vst.msk [vmem:[%s191 + $0xd8] sm:$0xff] %vm1450, %v1349
        %1479 = vst.msk [vmem:[%s191 + $0xe0] sm:$0xff] %vm1450, %v1350
        %1480 = vst.msk [vmem:[%s191 + $0xe8] sm:$0xff] %vm1450, %v1351
        %1481 = vst.msk [vmem:[%s191 + $0xf0] sm:$0xff] %vm1450, %v1352
        %1482 = vst.msk [vmem:[%s191 + $0xf8] sm:$0xff] %vm1450, %v1353
        %1483 = vst.msk [vmem:[%s191 + $0x100] sm:$0xff] %vm1450, %v1354
        %1484 = vst.msk [vmem:[%s191 + $0x108] sm:$0xff] %vm1450, %v1355
        %1485 = vst.msk [vmem:[%s191 + $0x110] sm:$0xff] %vm1450, %v1356
        %1486 = vst.msk [vmem:[%s191 + $0x118] sm:$0xff] %vm1450, %v1357
        %1487 = vst.msk [vmem:[%s191 + $0x120] sm:$0xff] %vm1450, %v1358
        %1488 = vst.msk [vmem:[%s191 + $0x128] sm:$0xff] %vm1450, %v1359
        %1489 = vst.msk [vmem:[%s191 + $0x130] sm:$0xff] %vm1450, %v1360
        %1490 = vst.msk [vmem:[%s191 + $0x138] sm:$0xff] %vm1450, %v1361
        %1491 = vst.msk [vmem:[%s191 + $0x140] sm:$0xff] %vm1450, %v1362
        %1492 = vst.msk [vmem:[%s191 + $0x148] sm:$0xff] %vm1450, %v1363
        %1493 = vst.msk [vmem:[%s191 + $0x150] sm:$0xff] %vm1450, %v1364
        %1494 = vst.msk [vmem:[%s191 + $0x158] sm:$0xff] %vm1450, %v1365
        %1495 = vst.msk [vmem:[%s191 + $0x160] sm:$0xff] %vm1450, %v1366
        %1496 = vst.msk [vmem:[%s191 + $0x168] sm:$0xff] %vm1450, %v1367
        %1497 = vst.msk [vmem:[%s191 + $0x170] sm:$0xff] %vm1450, %v1368
        %1498 = vst.msk [vmem:[%s191 + $0x178] sm:$0xff] %vm1450, %v1369
        %1499 = vst.msk [vmem:[%s191 + $0x180] sm:$0xff] %vm1450, %v1370
        %1500 = vst.msk [vmem:[%s191 + $0x188] sm:$0xff] %vm1450, %v1371
        %1501 = vst.msk [vmem:[%s191 + $0x190] sm:$0xff] %vm1450, %v1372
        %1502 = vst.msk [vmem:[%s191 + $0x198] sm:$0xff] %vm1450, %v1373
        %1503 = vst.msk [vmem:[%s191 + $0x1a0] sm:$0xff] %vm1450, %v1374
        %1504 = vst.msk [vmem:[%s191 + $0x1a8] sm:$0xff] %vm1450, %v1375
        %1505 = vst.msk [vmem:[%s191 + $0x1b0] sm:$0xff] %vm1450, %v1376
        %1506 = vst.msk [vmem:[%s191 + $0x1b8] sm:$0xff] %vm1450, %v1377
        %1507 = vst.msk [vmem:[%s191 + $0x1c0] sm:$0xff] %vm1450, %v1378
        %1508 = vst.msk [vmem:[%s191 + $0x1c8] sm:$0xff] %vm1450, %v1379
        %1509 = vst.msk [vmem:[%s191 + $0x1d0] sm:$0xff] %vm1450, %v1380
        %1510 = vst.msk [vmem:[%s191 + $0x1d8] sm:$0xff] %vm1450, %v1381
        %1511 = vst.msk [vmem:[%s191 + $0x1e0] sm:$0xff] %vm1450, %v1382
        %1512 = vst.msk [vmem:[%s191 + $0x1e8] sm:$0xff] %vm1450, %v1383
        %1513 = vst.msk [vmem:[%s191 + $0x1f0] sm:$0xff] %vm1450, %v1384
        %1514 = vst.msk [vmem:[%s191 + $0x1f8] sm:$0xff] %vm1450, %v1385
        %1515 = vst.msk [vmem:[%s191 + $0x200] sm:$0xff] %vm1450, %v1386
        %1516 = vst.msk [vmem:[%s191 + $0x208] sm:$0xff] %vm1450, %v1387
        %1517 = vst.msk [vmem:[%s191 + $0x210] sm:$0xff] %vm1450, %v1388
        %1518 = vst.msk [vmem:[%s191 + $0x218] sm:$0xff] %vm1450, %v1389
        %1519 = vst.msk [vmem:[%s191 + $0x220] sm:$0xff] %vm1450, %v1390
        %1520 = vst.msk [vmem:[%s191 + $0x228] sm:$0xff] %vm1450, %v1391
        %1521 = vst.msk [vmem:[%s191 + $0x230] sm:$0xff] %vm1450, %v1392
        %1522 = vst.msk [vmem:[%s191 + $0x238] sm:$0xff] %vm1450, %v1393
        %1523 = vst.msk [vmem:[%s191 + $0x240] sm:$0xff] %vm1450, %v1394
        %1524 = vst.msk [vmem:[%s191 + $0x248] sm:$0xff] %vm1450, %v1395
        %1525 = vst.msk [vmem:[%s191 + $0x250] sm:$0xff] %vm1450, %v1396
        %1526 = vst.msk [vmem:[%s191 + $0x258] sm:$0xff] %vm1450, %v1397
        %1527 = vst.msk [vmem:[%s191 + $0x260] sm:$0xff] %vm1450, %v1398
        %1528 = vst.msk [vmem:[%s191 + $0x268] sm:$0xff] %vm1450, %v1399
        %1529 = vst.msk [vmem:[%s191 + $0x270] sm:$0xff] %vm1450, %v1400
        %1530 = vst.msk [vmem:[%s191 + $0x278] sm:$0xff] %vm1450, %v1401
        %1531 = vst.msk [vmem:[%s191 + $0x280] sm:$0xff] %vm1450, %v1402
        %1532 = vst.msk [vmem:[%s191 + $0x288] sm:$0xff] %vm1450, %v1403
        %1533 = vst.msk [vmem:[%s191 + $0x290] sm:$0xff] %vm1450, %v1404
        %1534 = vst.msk [vmem:[%s191 + $0x298] sm:$0xff] %vm1450, %v1405
        %1535 = vst.msk [vmem:[%s191 + $0x2a0] sm:$0xff] %vm1450, %v1406
        %1536 = vst.msk [vmem:[%s191 + $0x2a8] sm:$0xff] %vm1450, %v1407
        %1537 = vst.msk [vmem:[%s191 + $0x2b0] sm:$0xff] %vm1450, %v1408
        %1538 = vst.msk [vmem:[%s191 + $0x2b8] sm:$0xff] %vm1450, %v1409
        %1539 = vst.msk [vmem:[%s191 + $0x2c0] sm:$0xff] %vm1450, %v1410
        %1540 = vst.msk [vmem:[%s191 + $0x2c8] sm:$0xff] %vm1450, %v1411
        %1541 = vst.msk [vmem:[%s191 + $0x2d0] sm:$0xff] %vm1450, %v1412
        %1542 = vst.msk [vmem:[%s191 + $0x2d8] sm:$0xff] %vm1450, %v1413
        %1543 = vst.msk [vmem:[%s191 + $0x2e0] sm:$0xff] %vm1450, %v1414
        %1544 = vst.msk [vmem:[%s191 + $0x2e8] sm:$0xff] %vm1450, %v1415
        %1545 = vst.msk [vmem:[%s191 + $0x2f0] sm:$0xff] %vm1450, %v1416
        %1546 = vst.msk [vmem:[%s191 + $0x2f8] sm:$0xff] %vm1450, %v1417
        %1547 = vst.msk [vmem:[%s191 + $0x300] sm:$0xff] %vm1450, %v1418
        %1548 = vst.msk [vmem:[%s191 + $0x308] sm:$0xff] %vm1450, %v1419
        %1549 = vst.msk [vmem:[%s191 + $0x310] sm:$0xff] %vm1450, %v1420
        %1550 = vst.msk [vmem:[%s191 + $0x318] sm:$0xff] %vm1450, %v1421
        %1551 = vst.msk [vmem:[%s191 + $0x320] sm:$0xff] %vm1450, %v1422
        %1552 = vst.msk [vmem:[%s191 + $0x328] sm:$0xff] %vm1450, %v1423
        %1553 = vst.msk [vmem:[%s191 + $0x330] sm:$0xff] %vm1450, %v1424
        %1554 = vst.msk [vmem:[%s191 + $0x338] sm:$0xff] %vm1450, %v1425
        %1555 = vst.msk [vmem:[%s191 + $0x340] sm:$0xff] %vm1450, %v1426
        %1556 = vst.msk [vmem:[%s191 + $0x348] sm:$0xff] %vm1450, %v1427
        %1557 = vst.msk [vmem:[%s191 + $0x350] sm:$0xff] %vm1450, %v1428
        %1558 = vst.msk [vmem:[%s191 + $0x358] sm:$0xff] %vm1450, %v1429
        %1559 = vst.msk [vmem:[%s191 + $0x360] sm:$0xff] %vm1450, %v1430
        %1560 = vst.msk [vmem:[%s191 + $0x368] sm:$0xff] %vm1450, %v1431
        %1561 = vst.msk [vmem:[%s191 + $0x370] sm:$0xff] %vm1450, %v1432
        %1562 = vst.msk [vmem:[%s191 + $0x378] sm:$0xff] %vm1450, %v1433
        %1563 = vst.msk [vmem:[%s191 + $0x380] sm:$0xff] %vm1450, %v1434
        %1564 = vst.msk [vmem:[%s191 + $0x388] sm:$0xff] %vm1450, %v1435
        %1565 = vst.msk [vmem:[%s191 + $0x390] sm:$0xff] %vm1450, %v1436
        %1566 = vst.msk [vmem:[%s191 + $0x398] sm:$0xff] %vm1450, %v1437
        %1567 = vst.msk [vmem:[%s191 + $0x3a0] sm:$0xff] %vm1450, %v1438
        %1568 = vst.msk [vmem:[%s191 + $0x3a8] sm:$0xff] %vm1450, %v1439
        %1569 = vst.msk [vmem:[%s191 + $0x3b0] sm:$0xff] %vm1450, %v1440
        %1570 = vst.msk [vmem:[%s191 + $0x3b8] sm:$0xff] %vm1450, %v1441
        %1571 = vst.msk [vmem:[%s191 + $0x3c0] sm:$0xff] %vm1450, %v1442
        %1572 = vst.msk [vmem:[%s191 + $0x3c8] sm:$0xff] %vm1450, %v1443
        %1573 = vst.msk [vmem:[%s191 + $0x3d0] sm:$0xff] %vm1450, %v1444
        %1574 = vst.msk [vmem:[%s191 + $0x3d8] sm:$0xff] %vm1450, %v1445
        %1575 = vst.msk [vmem:[%s191 + $0x3e0] sm:$0xff] %vm1450, %v1446
        %1576 = vst.msk [vmem:[%s191 + $0x3e8] sm:$0xff] %vm1450, %v1447
        %1577 = vst.msk [vmem:[%s191 + $0x3f0] sm:$0xff] %vm1450, %v1448
        %1578 = vst.msk [vmem:[%s191 + $0x3f8] sm:$0xff] %vm1450, %v1449
        %s1579 = smul.u32 128, %s17
        %p1580 = scmp.lt.s32.totalorder %s1579, 255
        %s1581 = scalar_select %p1580, %s1579, 255
        %s1582 = smul.addr %s1581, 8
        %s1583 = scalar_lea.vmem %s3, %s1582
        // Predicated region
        $region37: #{tpu_custom_call.1} parent=31 // pred_check
          %p1584 = pneg %p103
        $region38: #{tpu_custom_call.1} parent=31 // pred_check_branch
          %1586 = sbr.rel (%p1584) target = $region40
        $region39: #{tpu_custom_call.1} parent=31 // pred_region
          %s1587 = smul.u32 128, %s17
        $region40: #{tpu_custom_call.1} parent=31 // pred_fallthru
          _
      $region32: #{tpu_custom_call.1} parent=5 // pred_fallthru
        _
      %p1588 = scmp.le.s32.totalorder 2, %s12
      // Predicated region
      $region41: #{tpu_custom_call.1} parent=5 // pred_check
        %p1589 = pneg %p1588
      $region42: #{tpu_custom_call.1} parent=5 // pred_check_branch
        %1591 = sbr.rel (%p1589) target = $region44
      $region43: #{tpu_custom_call.1} parent=5 // pred_region
        %s1592 = ssub.s32 %s12, 2
        // Predicated region
        $region45: #{tpu_custom_call.1} parent=43 // pred_check
          %p1593 = pneg %p109
        $region46: #{tpu_custom_call.1} parent=43 // pred_check_branch
          %1595 = sbr.rel (%p1593) target = $region48
        $region47: #{tpu_custom_call.1} parent=43 // pred_region
          %s1596 = smul.u32 128, %s18
          %p1597 = scmp.lt.s32.totalorder %s1596, 255
          %s1598 = scalar_select %p1597, %s1596, 255
          %s1599 = smul.addr %s1598, 8
          %s1600 = scalar_lea.vmem %s3, %s1599
        $region48: #{tpu_custom_call.1} parent=43 // pred_fallthru
          _
      $region44: #{tpu_custom_call.1} parent=5 // pred_fallthru
        _
    $region6: #{tpu_custom_call.1} parent=1 // loop_footer
      %s16 = sadd.s32 1, %s12
    $region7: #{tpu_custom_call.1} parent=1 // loop_footer_branch
      %11 = sbr.rel target = $region3
    $region8: #{tpu_custom_call.1} parent=1 // loop_exit
      _
    %1601 = vsyncpa [#allocation3], 1
    %s1602 = scalar_lea.sflag [#allocation3], 1
    %1603 = vsyncpa %s1602, 1

</llo_original>
